<compile_context>
chip_gen: v6e
topology: v6e:2x2x1
jax: 0.10.0
libtpu: 0.0.40
codegen_flags: <defaults>
</compile_context>

<pallas_src>
import functools
import math

import jax
import jax.numpy as jnp
from jax.experimental import pallas as pl
from jax.experimental.pallas import tpu as pltpu


def _dgc_kernel(x_ref, adj_ref, rel_ref, w1_ref, b1_ref, w2r_ref, b2m_ref,
                bias_ref, out_ref, *, bt, ti, tj, f_in, f_out, mm_dtype):
    """One (batch-block, receiver-tile, sender-tile) grid step.

    x_ref    : (bt, ti, F_in)        sender node features of this tile
    adj_ref  : (bt, ti, tj, 1)       adjacency adj[b, i, j]
    rel_ref  : (bt, ti, tj, E)       edge features rel[b, i, j, :]
    w1_ref   : (E, H),   b1_ref : (1, H)
    w2r_ref  : (F_in, H, F_out)      WeightNet output weight, host-permuted
    b2m_ref  : (F_in, F_out)         WeightNet output bias, host-reshaped
    bias_ref : (1, F_out)            static output bias
    out_ref  : (bt, tj, F_out)       f32 accumulator, resident across sender tiles
    """
    hidden = w1_ref.shape[1]
    e_feats = rel_ref.shape[-1]
    nb = bt * ti              # (batch, sender) pairs this step
    ne = nb * tj              # edges this step

    # --- WeightNet hidden layer over all edges of the tile (MXU, f32 acc) --------
    rel2 = rel_ref[...].reshape(ne, e_feats)
    h = jnp.dot(rel2.astype(mm_dtype), w1_ref[...].astype(mm_dtype),
                preferred_element_type=jnp.float32) + b1_ref[...]
    h = jnp.maximum(h, 0.0)                                    # (ne, H), f32
    h3 = h.reshape(nb, tj, hidden)                             # (nb, tj, H)

    # --- per-sender fused output weight: W2x[s] = sum_k x[s,k] * W2[:, k, :] -----
    # F_in is small, so this is a short VPU loop (O(nb*F_in*H*F_out) << edge work)
    # instead of a lane->sublane relayout of a K=F_in matmul row.
    x2 = x_ref[...].reshape(nb, f_in)                          # (nb, F_in)
    w2x = x2[:, 0:1][:, :, None] * w2r_ref[0][None, :, :]
    for k in range(1, f_in):
        w2x = w2x + x2[:, k:k + 1][:, :, None] * w2r_ref[k][None, :, :]
    # w2x: (nb, H, F_out), f32

    # --- main contraction, batched over (batch, sender), on the MXU --------------
    msg = jnp.einsum('sjh,sho->sjo',
                     h3.astype(mm_dtype), w2x.astype(mm_dtype),
                     preferred_element_type=jnp.float32)       # (nb, tj, F_out)

    # --- WeightNet output bias + adjacency mask, both on the narrow F_out path ---
    #   msg = adj * (h @ W2x + x @ b2m)
    b2x = jnp.dot(x2, b2m_ref[...], preferred_element_type=jnp.float32)  # (nb, F_out)
    adj3 = adj_ref[...].reshape(nb, tj, 1)                     # (nb, tj, 1)
    msg = (msg + b2x[:, None, :]) * adj3

    # --- reduce over this tile's senders and accumulate into the output block ----
    contrib = msg.reshape(bt, ti, tj, f_out).sum(axis=1)       # (bt, tj, F_out)

    @pl.when(pl.program_id(2) == 0)
    def _init():
        out_ref[...] = contrib + bias_ref[...][None]           # fused init + bias

    @pl.when(pl.program_id(2) != 0)
    def _acc():
        out_ref[...] += contrib


def _largest_tile(n, cap):
    """Largest t <= cap with n % t == 0 and (t == n or t % 8 == 0); falls back to n."""
    if n <= cap:
        return n
    best = 0
    for t in range(8, cap + 1, 8):
        if n % t == 0:
            best = t
    return best if best > 0 else n


def dynamic_graph_conv(x, adj, rel, params, *,
                       batch_tile=1,
                       sender_tile=None,
                       receiver_tile=None,
                       mxu_dtype=jnp.float32,
                       vmem_budget_bytes=8 * 1024 * 1024):
    """x: (B, N, F_in), adj: (B, N, N), rel: (B, N, N, E) -> (B, N, F_out)."""
    bz, num, f_in = x.shape
    e_feats = rel.shape[-1]
    w1, b1, w2, b2, bias = params
    hidden = w1.shape[1]
    f_out = bias.shape[-1]

    bt = batch_tile
    # Tile heuristic: keep the double-buffered per-step edge slabs (rel + adj + h +
    # msg) inside a conservative VMEM budget (works for v7x 64 MiB and v5e/v6e
    # 128 MiB).  Large receiver tiles also amortize the per-sender W2x recompute.
    bytes_per_edge_row = 4 * (e_feats + 1 + hidden + 2 * f_out)
    if receiver_tile is None:
        receiver_tile = _largest_tile(num, 512)
    if sender_tile is None:
        max_rows = max(8, vmem_budget_bytes //
                       (2 * bt * receiver_tile * bytes_per_edge_row))
        sender_tile = _largest_tile(num, max_rows)
    ti, tj = sender_tile, receiver_tile

    assert bz % bt == 0, "batch_tile must divide the batch size"
    assert num % ti == 0 and num % tj == 0, "tiles must divide the node count"
    for t in (ti, tj):
        assert t == num or t % 8 == 0, "tiles must equal N or be a multiple of 8"

    # --- cheap host-side layout prep (no heavy compute moved out of the kernel) ---
    adj4 = adj.reshape(bz, num, num, 1).astype(jnp.float32)
    w2r = w2.reshape(hidden, f_in, f_out).transpose(1, 0, 2)   # (F_in, H, F_out)
    b2m = b2.reshape(f_in, f_out)
    b1_2 = b1.reshape(1, hidden)
    bias2 = bias.reshape(1, f_out)

    kernel = functools.partial(_dgc_kernel, bt=bt, ti=ti, tj=tj,
                               f_in=f_in, f_out=f_out, mm_dtype=mxu_dtype)

    grid = (bz // bt, num // tj, num // ti)      # sender (reduction) axis last
    grid_spec = pltpu.PrefetchScalarGridSpec(
        num_scalar_prefetch=0,
        grid=grid,
        in_specs=[
            pl.BlockSpec((bt, ti, f_in), lambda b, j, i: (b, i, 0)),             # x
            pl.BlockSpec((bt, ti, tj, 1), lambda b, j, i: (b, i, j, 0)),         # adj
            pl.BlockSpec((bt, ti, tj, e_feats), lambda b, j, i: (b, i, j, 0)),   # rel
            pl.BlockSpec((e_feats, hidden), lambda b, j, i: (0, 0)),             # W1
            pl.BlockSpec((1, hidden), lambda b, j, i: (0, 0)),                   # b1
            pl.BlockSpec((f_in, hidden, f_out), lambda b, j, i: (0, 0, 0)),      # W2 (permuted)
            pl.BlockSpec((f_in, f_out), lambda b, j, i: (0, 0)),                 # b2
            pl.BlockSpec((1, f_out), lambda b, j, i: (0, 0)),                    # static bias
        ],
        out_specs=pl.BlockSpec((bt, tj, f_out), lambda b, j, i: (b, j, 0)),
    )

    return pl.pallas_call(
        kernel,
        out_shape=jax.ShapeDtypeStruct((bz, num, f_out), jnp.float32),
        grid_spec=grid_spec,
        compiler_params=pltpu.CompilerParams(
            dimension_semantics=("parallel", "parallel", "arbitrary")),
    )(x, adj4, rel, w1, b1_2, w2r, b2m, bias2)


def init_params(key, e_feats, hidden, f_in, f_out):
    """Deterministic PyTorch-Linear-style uniform init (same shapes as the module)."""
    k1, k2, k3, k4, k5 = jax.random.split(key, 5)
    bound1 = 1.0 / math.sqrt(e_feats)
    w1 = jax.random.uniform(k1, (e_feats, hidden), jnp.float32, -bound1, bound1)
    b1 = jax.random.uniform(k2, (1, hidden), jnp.float32, -bound1, bound1)
    bound2 = 1.0 / math.sqrt(hidden)
    w2 = jax.random.uniform(k3, (hidden, f_in * f_out), jnp.float32, -bound2, bound2)
    b2 = jax.random.uniform(k4, (1, f_in * f_out), jnp.float32, -bound2, bound2)
    bound_b = 1.0 / math.sqrt(f_in)   # matches nn.init fan_in computed on (F_out, F_in)
    bias = jax.random.uniform(k5, (1, f_out), jnp.float32, -bound_b, bound_b)
    return w1, b1, w2, b2, bias


def reference(x, adj, rel, params):
    """Pure-JAX reference matching the PyTorch forward."""
    w1, b1, w2, b2, bias = params
    bz, num, f_in = x.shape
    f_out = bias.shape[-1]
    h = jax.nn.relu(rel @ w1 + b1[0])                                    # (B,N,N,H)
    w = (h @ w2 + b2[0]).reshape(bz, num, num, f_in, f_out)              # (B,N,N,F_in,F_out)
    msg = jnp.einsum('bif,bijfo->bijo', x, w) * adj[..., None]
    return msg.sum(axis=1) + bias[0]


if __name__ == "__main__":
    # Small deterministic shapes consistent with the module.
    bz, num = 2, 16            # N=16 so both the receiver and sender tiling are exercised
    f_in, f_out = 4, 8
    e_feats, hidden = 4, 32

    key = jax.random.PRNGKey(0)
    kx, ka, kr, kp = jax.random.split(key, 4)

    x = jax.random.normal(kx, (bz, num, f_in), jnp.float32)
    adj = (jax.random.uniform(ka, (bz, num, num)) > 0.5).astype(jnp.float32)
    rel = jax.random.normal(kr, (bz, num, num, e_feats), jnp.float32)
    params = init_params(kp, e_feats, hidden, f_in, f_out)

    ref = reference(x, adj, rel, params)

    # f32 MXU run -- 2x2x2 grid: parallel batch & receiver axes, sender-tile
    # reduction axis accumulating into the resident output block.
    out = dynamic_graph_conv(x, adj, rel, params,
                             batch_tile=1, sender_tile=8, receiver_tile=8,
                             mxu_dtype=jnp.float32)
    out = jax.block_until_ready(out)
    assert out.shape == (bz, num, f_out)
    assert jnp.allclose(out, ref, rtol=1e-3, atol=1e-3), "f32 kernel mismatch vs reference"

    # Default (untiled-N) path with the tile heuristic.
    out_full = dynamic_graph_conv(x, adj, rel, params, mxu_dtype=jnp.float32)
    out_full = jax.block_until_ready(out_full)
    assert jnp.allclose(out_full, ref, rtol=1e-3, atol=1e-3), "full-tile kernel mismatch"

    # bf16 MXU operands (f32 accumulation) -- recommended production setting.
    out_bf16 = dynamic_graph_conv(x, adj, rel, params,
                                  batch_tile=1, sender_tile=8, receiver_tile=8,
                                  mxu_dtype=jnp.bfloat16)
    out_bf16 = jax.block_until_ready(out_bf16)
    assert jnp.allclose(out_bf16, ref, rtol=1e-1, atol=1e-1), "bf16 kernel mismatch vs reference"

    print("KERNEL_OK")
</pallas_src>

<mosaic_0001>
module attributes {stable_mosaic.version = 11 : i64} {
  func.func @_dgc_kernel(%arg0: i32, %arg1: i32, %arg2: i32, %arg3: memref<1x8x4xf32, #tpu.memory_space<vmem>>, %arg4: memref<1x8x8x1xf32, #tpu.memory_space<vmem>>, %arg5: memref<1x8x8x4xf32, #tpu.memory_space<vmem>>, %arg6: memref<4x32xf32, #tpu.memory_space<vmem>>, %arg7: memref<1x32xf32, #tpu.memory_space<vmem>>, %arg8: memref<4x32x8xf32, #tpu.memory_space<vmem>>, %arg9: memref<4x8xf32, #tpu.memory_space<vmem>>, %arg10: memref<1x8xf32, #tpu.memory_space<vmem>>, %arg11: memref<1x8x8xf32, #tpu.memory_space<vmem>>) attributes {dimension_semantics = [#tpu.dimension_semantics<parallel>, #tpu.dimension_semantics<parallel>, #tpu.dimension_semantics<arbitrary>], iteration_bounds = array<i64: 2, 2, 2>, scalar_prefetch = 0 : i64, scratch_operands = 0 : i64, tpu.core_type = #tpu.core_type<tc>, window_params = [{transform_indices = @transform_0, window_bounds = array<i64: 1, 8, 4>}, {transform_indices = @transform_1, window_bounds = array<i64: 1, 8, 8, 1>}, {transform_indices = @transform_2, window_bounds = array<i64: 1, 8, 8, 4>}, {pipeline_mode = #tpu.pipeline_mode<synchronous>, transform_indices = @transform_3, window_bounds = array<i64: 4, 32>}, {pipeline_mode = #tpu.pipeline_mode<synchronous>, transform_indices = @transform_4, window_bounds = array<i64: 1, 32>}, {pipeline_mode = #tpu.pipeline_mode<synchronous>, transform_indices = @transform_5, window_bounds = array<i64: 4, 32, 8>}, {pipeline_mode = #tpu.pipeline_mode<synchronous>, transform_indices = @transform_6, window_bounds = array<i64: 4, 8>}, {pipeline_mode = #tpu.pipeline_mode<synchronous>, transform_indices = @transform_7, window_bounds = array<i64: 1, 8>}, {transform_indices = @transform_8, window_bounds = array<i64: 1, 8, 8>}]} {
    %c0 = arith.constant 0 : index
    %c0_0 = arith.constant 0 : index
    %c0_1 = arith.constant 0 : index
    %c0_2 = arith.constant 0 : index
    %0 = vector.load %arg5[%c0, %c0_0, %c0_1, %c0_2] : memref<1x8x8x4xf32, #tpu.memory_space<vmem>>, vector<1x8x8x4xf32>
    %1 = vector.shape_cast %0 : vector<1x8x8x4xf32> to vector<64x4xf32>
    %c0_3 = arith.constant 0 : index
    %c0_4 = arith.constant 0 : index
    %2 = vector.load %arg6[%c0_3, %c0_4] : memref<4x32xf32, #tpu.memory_space<vmem>>, vector<4x32xf32>
    %cst = arith.constant dense<0.000000e+00> : vector<64x32xf32>
    %3 = tpu.matmul %1, %2, %cst {dimension_numbers = #tpu.dot_dimension_numbers<[1], [0], [0], [1], [0, 0, 1, 1], [], []>} : vector<64x4xf32>, vector<4x32xf32>, vector<64x32xf32> -> vector<64x32xf32>
    %c0_5 = arith.constant 0 : index
    %c0_6 = arith.constant 0 : index
    %4 = vector.load %arg7[%c0_5, %c0_6] : memref<1x32xf32, #tpu.memory_space<vmem>>, vector<1x32xf32>
    %5 = vector.broadcast %4 : vector<1x32xf32> to vector<64x32xf32>
    %6 = arith.addf %3, %5 : vector<64x32xf32>
    %cst_7 = arith.constant 0.000000e+00 : f32
    %7 = vector.broadcast %cst_7 : f32 to vector<64x32xf32>
    %8 = arith.maximumf %6, %7 : vector<64x32xf32>
    %9 = vector.shape_cast %8 : vector<64x32xf32> to vector<8x8x32xf32>
    %c0_8 = arith.constant 0 : index
    %c0_9 = arith.constant 0 : index
    %c0_10 = arith.constant 0 : index
    %10 = vector.load %arg3[%c0_8, %c0_9, %c0_10] : memref<1x8x4xf32, #tpu.memory_space<vmem>>, vector<1x8x4xf32>
    %11 = vector.shape_cast %10 : vector<1x8x4xf32> to vector<8x4xf32>
    %12 = vector.extract_strided_slice %11 {offsets = [0, 0], sizes = [8, 1], strides = [1, 1]} : vector<8x4xf32> to vector<8x1xf32>
    %13 = vector.shape_cast %12 : vector<8x1xf32> to vector<8x1x1xf32>
    %c0_11 = arith.constant 0 : index
    %c0_12 = arith.constant 0 : index
    %c0_13 = arith.constant 0 : index
    %14 = vector.load %arg8[%c0_11, %c0_12, %c0_13] : memref<4x32x8xf32, #tpu.memory_space<vmem>>, vector<1x32x8xf32>
    %15 = vector.shape_cast %14 : vector<1x32x8xf32> to vector<32x8xf32>
    %16 = vector.shape_cast %15 : vector<32x8xf32> to vector<1x32x8xf32>
    %17 = vector.broadcast %13 : vector<8x1x1xf32> to vector<8x32x8xf32>
    %18 = vector.broadcast %16 : vector<1x32x8xf32> to vector<8x32x8xf32>
    %19 = arith.mulf %17, %18 : vector<8x32x8xf32>
    %20 = vector.extract_strided_slice %11 {offsets = [0, 1], sizes = [8, 1], strides = [1, 1]} : vector<8x4xf32> to vector<8x1xf32>
    %21 = vector.shape_cast %20 : vector<8x1xf32> to vector<8x1x1xf32>
    %c1 = arith.constant 1 : index
    %c0_14 = arith.constant 0 : index
    %c0_15 = arith.constant 0 : index
    %22 = vector.load %arg8[%c1, %c0_14, %c0_15] : memref<4x32x8xf32, #tpu.memory_space<vmem>>, vector<1x32x8xf32>
    %23 = vector.shape_cast %22 : vector<1x32x8xf32> to vector<32x8xf32>
    %24 = vector.shape_cast %23 : vector<32x8xf32> to vector<1x32x8xf32>
    %25 = vector.broadcast %21 : vector<8x1x1xf32> to vector<8x32x8xf32>
    %26 = vector.broadcast %24 : vector<1x32x8xf32> to vector<8x32x8xf32>
    %27 = arith.mulf %25, %26 : vector<8x32x8xf32>
    %28 = arith.addf %19, %27 : vector<8x32x8xf32>
    %29 = vector.extract_strided_slice %11 {offsets = [0, 2], sizes = [8, 1], strides = [1, 1]} : vector<8x4xf32> to vector<8x1xf32>
    %30 = vector.shape_cast %29 : vector<8x1xf32> to vector<8x1x1xf32>
    %c2 = arith.constant 2 : index
    %c0_16 = arith.constant 0 : index
    %c0_17 = arith.constant 0 : index
    %31 = vector.load %arg8[%c2, %c0_16, %c0_17] : memref<4x32x8xf32, #tpu.memory_space<vmem>>, vector<1x32x8xf32>
    %32 = vector.shape_cast %31 : vector<1x32x8xf32> to vector<32x8xf32>
    %33 = vector.shape_cast %32 : vector<32x8xf32> to vector<1x32x8xf32>
    %34 = vector.broadcast %30 : vector<8x1x1xf32> to vector<8x32x8xf32>
    %35 = vector.broadcast %33 : vector<1x32x8xf32> to vector<8x32x8xf32>
    %36 = arith.mulf %34, %35 : vector<8x32x8xf32>
    %37 = arith.addf %28, %36 : vector<8x32x8xf32>
    %38 = vector.extract_strided_slice %11 {offsets = [0, 3], sizes = [8, 1], strides = [1, 1]} : vector<8x4xf32> to vector<8x1xf32>
    %39 = vector.shape_cast %38 : vector<8x1xf32> to vector<8x1x1xf32>
    %c3 = arith.constant 3 : index
    %c0_18 = arith.constant 0 : index
    %c0_19 = arith.constant 0 : index
    %40 = vector.load %arg8[%c3, %c0_18, %c0_19] : memref<4x32x8xf32, #tpu.memory_space<vmem>>, vector<1x32x8xf32>
    %41 = vector.shape_cast %40 : vector<1x32x8xf32> to vector<32x8xf32>
    %42 = vector.shape_cast %41 : vector<32x8xf32> to vector<1x32x8xf32>
    %43 = vector.broadcast %39 : vector<8x1x1xf32> to vector<8x32x8xf32>
    %44 = vector.broadcast %42 : vector<1x32x8xf32> to vector<8x32x8xf32>
    %45 = arith.mulf %43, %44 : vector<8x32x8xf32>
    %46 = arith.addf %37, %45 : vector<8x32x8xf32>
    "tpu.trace_start"() <{level = 10 : i32, message = "sjh,sho->sjo"}> : () -> ()
    %cst_20 = arith.constant dense<0.000000e+00> : vector<8x8x8xf32>
    %47 = tpu.matmul %9, %46, %cst_20 {dimension_numbers = #tpu.dot_dimension_numbers<[2], [1], [1], [2], [0, 0, 0, 1, 1, 2], [0], [0]>} : vector<8x8x32xf32>, vector<8x32x8xf32>, vector<8x8x8xf32> -> vector<8x8x8xf32>
    "tpu.trace_stop"() : () -> ()
    %c0_21 = arith.constant 0 : index
    %c0_22 = arith.constant 0 : index
    %48 = vector.load %arg9[%c0_21, %c0_22] : memref<4x8xf32, #tpu.memory_space<vmem>>, vector<4x8xf32>
    %cst_23 = arith.constant dense<0.000000e+00> : vector<8x8xf32>
    %49 = tpu.matmul %11, %48, %cst_23 {dimension_numbers = #tpu.dot_dimension_numbers<[1], [0], [0], [1], [0, 0, 1, 1], [], []>} : vector<8x4xf32>, vector<4x8xf32>, vector<8x8xf32> -> vector<8x8xf32>
    %c0_24 = arith.constant 0 : index
    %c0_25 = arith.constant 0 : index
    %c0_26 = arith.constant 0 : index
    %c0_27 = arith.constant 0 : index
    %50 = vector.load %arg4[%c0_24, %c0_25, %c0_26, %c0_27] : memref<1x8x8x1xf32, #tpu.memory_space<vmem>>, vector<1x8x8x1xf32>
    %51 = vector.shape_cast %50 : vector<1x8x8x1xf32> to vector<8x8x1xf32>
    %52 = vector.shape_cast %49 : vector<8x8xf32> to vector<8x1x8xf32>
    %53 = vector.broadcast %52 : vector<8x1x8xf32> to vector<8x8x8xf32>
    %54 = arith.addf %47, %53 : vector<8x8x8xf32>
    %55 = vector.broadcast %51 : vector<8x8x1xf32> to vector<8x8x8xf32>
    %56 = arith.mulf %54, %55 : vector<8x8x8xf32>
    %57 = vector.shape_cast %56 : vector<8x8x8xf32> to vector<1x8x8x8xf32>
    %cst_28 = arith.constant dense<0.000000e+00> : vector<1x8x8xf32>
    %58 = vector.multi_reduction <add>, %57, %cst_28 [1] : vector<1x8x8x8xf32> to vector<1x8x8xf32>
    %c0_i32 = arith.constant 0 : i32
    %59 = arith.cmpi eq, %arg2, %c0_i32 : i32
    %60 = arith.extui %59 : i1 to i32
    %c0_i32_29 = arith.constant 0 : i32
    %61 = arith.cmpi ne, %60, %c0_i32_29 : i32
    scf.if %61 {
      %c0_32 = arith.constant 0 : index
      %c0_33 = arith.constant 0 : index
      %65 = vector.load %arg10[%c0_32, %c0_33] : memref<1x8xf32, #tpu.memory_space<vmem>>, vector<1x8xf32>
      %66 = vector.shape_cast %65 : vector<1x8xf32> to vector<1x1x8xf32>
      %67 = vector.broadcast %66 : vector<1x1x8xf32> to vector<1x8x8xf32>
      %68 = arith.addf %58, %67 : vector<1x8x8xf32>
      %c0_34 = arith.constant 0 : index
      %c0_35 = arith.constant 0 : index
      %c0_36 = arith.constant 0 : index
      %69 = vector.load %arg11[%c0_34, %c0_35, %c0_36] : memref<1x8x8xf32, #tpu.memory_space<vmem>>, vector<1x8x8xf32>
      tpu.vector_store %arg11[%c0_34, %c0_35, %c0_36], %68 {strides = array<i32>} : memref<1x8x8xf32, #tpu.memory_space<vmem>>, vector<1x8x8xf32>,
    } else {
    }
    %c0_i32_30 = arith.constant 0 : i32
    %62 = arith.cmpi ne, %arg2, %c0_i32_30 : i32
    %63 = arith.extui %62 : i1 to i32
    %c0_i32_31 = arith.constant 0 : i32
    %64 = arith.cmpi ne, %63, %c0_i32_31 : i32
    scf.if %64 {
      %c0_32 = arith.constant 0 : index
      %c0_33 = arith.constant 0 : index
      %c0_34 = arith.constant 0 : index
      %65 = vector.load %arg11[%c0_32, %c0_33, %c0_34] : memref<1x8x8xf32, #tpu.memory_space<vmem>>, vector<1x8x8xf32>
      %66 = arith.addf %65, %58 : vector<1x8x8xf32>
      %c0_35 = arith.constant 0 : index
      %c0_36 = arith.constant 0 : index
      %c0_37 = arith.constant 0 : index
      %67 = vector.load %arg11[%c0_35, %c0_36, %c0_37] : memref<1x8x8xf32, #tpu.memory_space<vmem>>, vector<1x8x8xf32>
      tpu.vector_store %arg11[%c0_35, %c0_36, %c0_37], %66 {strides = array<i32>} : memref<1x8x8xf32, #tpu.memory_space<vmem>>, vector<1x8x8xf32>,
    } else {
    }
    return
  }
  func.func @transform_0(%arg0: i32, %arg1: i32, %arg2: i32) -> (i32, i32, i32) {
    %c0_i32 = arith.constant 0 : i32
    %c0_i32_0 = arith.constant 0 : i32
    return %arg0, %arg2, %c0_i32 : i32, i32, i32
  }
  func.func @transform_1(%arg0: i32, %arg1: i32, %arg2: i32) -> (i32, i32, i32, i32) {
    %c0_i32 = arith.constant 0 : i32
    %c0_i32_0 = arith.constant 0 : i32
    return %arg0, %arg2, %arg1, %c0_i32 : i32, i32, i32, i32
  }
  func.func @transform_2(%arg0: i32, %arg1: i32, %arg2: i32) -> (i32, i32, i32, i32) {
    %c0_i32 = arith.constant 0 : i32
    %c0_i32_0 = arith.constant 0 : i32
    return %arg0, %arg2, %arg1, %c0_i32 : i32, i32, i32, i32
  }
  func.func @transform_3(%arg0: i32, %arg1: i32, %arg2: i32) -> (i32, i32) {
    %c0_i32 = arith.constant 0 : i32
    %c0_i32_0 = arith.constant 0 : i32
    %c0_i32_1 = arith.constant 0 : i32
    return %c0_i32, %c0_i32_0 : i32, i32
  }
  func.func @transform_4(%arg0: i32, %arg1: i32, %arg2: i32) -> (i32, i32) {
    %c0_i32 = arith.constant 0 : i32
    %c0_i32_0 = arith.constant 0 : i32
    %c0_i32_1 = arith.constant 0 : i32
    return %c0_i32, %c0_i32_0 : i32, i32
  }
  func.func @transform_5(%arg0: i32, %arg1: i32, %arg2: i32) -> (i32, i32, i32) {
    %c0_i32 = arith.constant 0 : i32
    %c0_i32_0 = arith.constant 0 : i32
    %c0_i32_1 = arith.constant 0 : i32
    %c0_i32_2 = arith.constant 0 : i32
    return %c0_i32, %c0_i32_0, %c0_i32_1 : i32, i32, i32
  }
  func.func @transform_6(%arg0: i32, %arg1: i32, %arg2: i32) -> (i32, i32) {
    %c0_i32 = arith.constant 0 : i32
    %c0_i32_0 = arith.constant 0 : i32
    %c0_i32_1 = arith.constant 0 : i32
    return %c0_i32, %c0_i32_0 : i32, i32
  }
  func.func @transform_7(%arg0: i32, %arg1: i32, %arg2: i32) -> (i32, i32) {
    %c0_i32 = arith.constant 0 : i32
    %c0_i32_0 = arith.constant 0 : i32
    %c0_i32_1 = arith.constant 0 : i32
    return %c0_i32, %c0_i32_0 : i32, i32
  }
  func.func @transform_8(%arg0: i32, %arg1: i32, %arg2: i32) -> (i32, i32, i32) {
    %c0_i32 = arith.constant 0 : i32
    %c0_i32_0 = arith.constant 0 : i32
    return %arg0, %arg1, %c0_i32 : i32, i32, i32
  }
}

</mosaic_0001>

<llo_original>
// kernel: tpu_custom_call.1
$region0: #{tpu_custom_call.1}
  #allocation0 [shape = 'u32[]', space=smem, size = 0x4, offset = 0x4, fixed_abs, tag = 'smem constant byte address 0x4 - core index']
  #allocation1 [shape = 'u32[144,128]{1,0:T(1,128)}', space=vmem, size = 0x12000, scoped, tag = 'internal scratch']
  %s0 = inlined_call_operand.vmem [shape: f32[2,16,4], index: 0, kind: input, shape index: {}]
  %s1 = inlined_call_operand.vmem [shape: f32[2,16,16,1], index: 1, kind: input, shape index: {}]
  %s2 = inlined_call_operand.vmem [shape: f32[2,16,16,4], index: 2, kind: input, shape index: {}]
  %s3 = inlined_call_operand.vmem [shape: f32[4,32], index: 3, kind: input, shape index: {}]
  %s4 = inlined_call_operand.vmem [shape: f32[1,32], index: 4, kind: input, shape index: {}]
  %s5 = inlined_call_operand.vmem [shape: f32[4,32,8], index: 5, kind: input, shape index: {}]
  %s6 = inlined_call_operand.vmem [shape: f32[4,8], index: 6, kind: input, shape index: {}]
  %s7 = inlined_call_operand.vmem [shape: f32[1,8], index: 7, kind: input, shape index: {}]
  %s8 = inlined_call_operand.vmem [shape: f32[2,16,8], index: 8, kind: output, shape index: {}]
  %s9 = sld [smem:[#allocation0]]
  $region149: #{tpu_custom_call.1} parent=0
    _
  %s11 = ssub.s32 1, %s9
  %s12 = scalar_select 0, %s11, %s9
  $region1: #{tpu_custom_call.1} parent=0
    #allocation2 [shape = 'u8[65536]{0}', space=vmem, size = 0x10000, scoped, tag = 'input window, operand 1']
    #allocation3 [shape = 'u8[65536]{0}', space=vmem, size = 0x10000, scoped, tag = 'input window, operand 2']
    loop: start=0, step=1, limit=10
    $region2: #{tpu_custom_call.1} parent=1 // loop_pre_header
      _
    $region3: #{tpu_custom_call.1} parent=1 // loop_header
      %s14 = sphi 0, %s18
      %p15 = scmp.ge.s32.totalorder %s14, 10
      %s21 = sphi 0, %s40
      %s22 = sphi 0, %s36
      %s23 = sphi 0, %s32
      %s24 = sphi 0, %s21
      %s25 = sphi 0, %s22
      %s26 = sphi 0, %s23
      %s27 = sphi 0, %s24
      %s28 = sphi 0, %s25
      %s29 = sphi 0, %s26
      %s45 = sphi 0, %s47
      %s48 = sphi 0, %s45
      %s49 = sphi 0, %s48
      %s65 = sphi 0, %s49
      %s75 = sphi 0, %s77
      %s78 = sphi 0, %s75
      %s79 = sphi 0, %s78
      %s95 = sphi 0, %s79
      %s105 = sphi 0, %s107
      %s108 = sphi 0, %s105
      %s109 = sphi 0, %s108
      %s125 = sphi 0, %s109
      %s129 = sphi 0, %s129
      %s131 = sphi 0, %s129
      %s132 = sphi 0, %s131
      %s146 = sphi 0, %s132
      %s150 = sphi 0, %s150
      %s152 = sphi 0, %s150
      %s153 = sphi 0, %s152
      %s167 = sphi 0, %s153
      %s171 = sphi 0, %s171
      %s173 = sphi 0, %s171
      %s174 = sphi 0, %s173
      %s188 = sphi 0, %s174
      %s192 = sphi 0, %s192
      %s194 = sphi 0, %s192
      %s195 = sphi 0, %s194
      %s209 = sphi 0, %s195
      %s213 = sphi 0, %s213
      %s215 = sphi 0, %s213
      %s216 = sphi 0, %s215
      %s230 = sphi 0, %s216
      %s238 = sphi 0, %s240
      %s241 = sphi 0, %s238
      %s242 = sphi 0, %s241
      %s258 = sphi 0, %s242
    $region4: #{tpu_custom_call.1} parent=1 // loop_header_branch
      %17 = sbr.rel (%p15) target = $region8
    $region5: #{tpu_custom_call.1} parent=1 // loop_body
      %s19 = ssub.s32 %s14, 1
      %s20 = ssub.s32 %s14, 2
      %s30 = sadd.s32 1, %s23
      %p31 = scmp.ge.s32.totalorder %s30, 2
      %s32 = scalar_select %p31, 0, %s30
      %s33 = sadd.s32 1, %s22
      %s34 = scalar_select %p31, %s33, %s22
      %p35 = scmp.ge.s32.totalorder %s34, 2
      %s36 = scalar_select %p35, 0, %s34
      %s37 = sadd.s32 1, %s21
      %s38 = scalar_select %p35, %s37, %s21
      %p39 = scmp.ge.s32.totalorder %s38, 2
      %s40 = scalar_select %p39, 0, %s38
      %s41 = ssub.s32 %s21, %s40
      %s42 = ssub.s32 %s23, %s32
      %s43 = sor.u32 %s41, %s42
      %p44 = scmp.eq.s32.totalorder %s43, 0
      %s46 = sadd.s32 %s45, 1
      %s47 = scalar_select %p44, %s45, %s46
      %p50 = pneg %p44
      %p51 = scmp.eq.s32.totalorder %s14, 7
      %p52 = por %p50, %p51
      %p53 = scmp.ne.s32.totalorder %s45, %s48
      %p54 = scmp.eq.s32.totalorder %s14, 0
      %p55 = por %p53, %p54
      %p56 = scmp.ne.s32.totalorder %s45, %s48
      %p57 = scmp.eq.s32.totalorder %s19, 7
      %p58 = por %p56, %p57
      %p59 = scmp.ne.s32.totalorder %s48, %s49
      %p60 = scmp.eq.s32.totalorder %s19, 0
      %p61 = por %p59, %p60
      %p62 = scmp.ne.s32.totalorder %s48, %s49
      %p63 = scmp.eq.s32.totalorder %s20, 7
      %p64 = por %p62, %p63
      %p66 = scmp.ne.s32.totalorder %s49, %s65
      %p67 = scmp.eq.s32.totalorder %s20, 0
      %p68 = por %p66, %p67
      %s69 = ssub.s32 %s21, %s40
      %s70 = ssub.s32 %s23, %s32
      %s71 = sor.u32 %s69, %s70
      %s72 = ssub.s32 %s22, %s36
      %s73 = sor.u32 %s71, %s72
      %p74 = scmp.eq.s32.totalorder %s73, 0
      %s76 = sadd.s32 %s75, 1
      %s77 = scalar_select %p74, %s75, %s76
      %p80 = pneg %p74
      %p81 = scmp.eq.s32.totalorder %s14, 7
      %p82 = por %p80, %p81
      %p83 = scmp.ne.s32.totalorder %s75, %s78
      %p84 = scmp.eq.s32.totalorder %s14, 0
      %p85 = por %p83, %p84
      %p86 = scmp.ne.s32.totalorder %s75, %s78
      %p87 = scmp.eq.s32.totalorder %s19, 7
      %p88 = por %p86, %p87
      %p89 = scmp.ne.s32.totalorder %s78, %s79
      %p90 = scmp.eq.s32.totalorder %s19, 0
      %p91 = por %p89, %p90
      %p92 = scmp.ne.s32.totalorder %s78, %s79
      %p93 = scmp.eq.s32.totalorder %s20, 7
      %p94 = por %p92, %p93
      %p96 = scmp.ne.s32.totalorder %s79, %s95
      %p97 = scmp.eq.s32.totalorder %s20, 0
      %p98 = por %p96, %p97
      %s99 = ssub.s32 %s21, %s40
      %s100 = ssub.s32 %s23, %s32
      %s101 = sor.u32 %s99, %s100
      %s102 = ssub.s32 %s22, %s36
      %s103 = sor.u32 %s101, %s102
      %p104 = scmp.eq.s32.totalorder %s103, 0
      %s106 = sadd.s32 %s105, 1
      %s107 = scalar_select %p104, %s105, %s106
      %p110 = pneg %p104
      %p111 = scmp.eq.s32.totalorder %s14, 7
      %p112 = por %p110, %p111
      %p113 = scmp.ne.s32.totalorder %s105, %s108
      %p114 = scmp.eq.s32.totalorder %s14, 0
      %p115 = por %p113, %p114
      %p116 = scmp.ne.s32.totalorder %s105, %s108
      %p117 = scmp.eq.s32.totalorder %s19, 7
      %p118 = por %p116, %p117
      %p119 = scmp.ne.s32.totalorder %s108, %s109
      %p120 = scmp.eq.s32.totalorder %s19, 0
      %p121 = por %p119, %p120
      %p122 = scmp.ne.s32.totalorder %s108, %s109
      %p123 = scmp.eq.s32.totalorder %s20, 7
      %p124 = por %p122, %p123
      %p126 = scmp.ne.s32.totalorder %s109, %s125
      %p127 = scmp.eq.s32.totalorder %s20, 0
      %p128 = por %p126, %p127
      %s130 = sadd.s32 %s129, 1
      %p133 = scmp.eq.s32.totalorder %s14, 7
      %p134 = scmp.ne.s32.totalorder %s129, %s131
      %p135 = scmp.eq.s32.totalorder %s14, 0
      %p136 = por %p134, %p135
      %p137 = scmp.ne.s32.totalorder %s129, %s131
      %p138 = scmp.eq.s32.totalorder %s19, 7
      %p139 = por %p137, %p138
      %p140 = scmp.ne.s32.totalorder %s131, %s132
      %p141 = scmp.eq.s32.totalorder %s19, 0
      %p142 = por %p140, %p141
      %p143 = scmp.ne.s32.totalorder %s131, %s132
      %p144 = scmp.eq.s32.totalorder %s20, 7
      %p145 = por %p143, %p144
      %p147 = scmp.ne.s32.totalorder %s132, %s146
      %p148 = scmp.eq.s32.totalorder %s20, 0
      %p149 = por %p147, %p148
      %s151 = sadd.s32 %s150, 1
      %p154 = scmp.eq.s32.totalorder %s14, 7
      %p155 = scmp.ne.s32.totalorder %s150, %s152
      %p156 = scmp.eq.s32.totalorder %s14, 0
      %p157 = por %p155, %p156
      %p158 = scmp.ne.s32.totalorder %s150, %s152
      %p159 = scmp.eq.s32.totalorder %s19, 7
      %p160 = por %p158, %p159
      %p161 = scmp.ne.s32.totalorder %s152, %s153
      %p162 = scmp.eq.s32.totalorder %s19, 0
      %p163 = por %p161, %p162
      %p164 = scmp.ne.s32.totalorder %s152, %s153
      %p165 = scmp.eq.s32.totalorder %s20, 7
      %p166 = por %p164, %p165
      %p168 = scmp.ne.s32.totalorder %s153, %s167
      %p169 = scmp.eq.s32.totalorder %s20, 0
      %p170 = por %p168, %p169
      %s172 = sadd.s32 %s171, 1
      %p175 = scmp.eq.s32.totalorder %s14, 7
      %p176 = scmp.ne.s32.totalorder %s171, %s173
      %p177 = scmp.eq.s32.totalorder %s14, 0
      %p178 = por %p176, %p177
      %p179 = scmp.ne.s32.totalorder %s171, %s173
      %p180 = scmp.eq.s32.totalorder %s19, 7
      %p181 = por %p179, %p180
      %p182 = scmp.ne.s32.totalorder %s173, %s174
      %p183 = scmp.eq.s32.totalorder %s19, 0
      %p184 = por %p182, %p183
      %p185 = scmp.ne.s32.totalorder %s173, %s174
      %p186 = scmp.eq.s32.totalorder %s20, 7
      %p187 = por %p185, %p186
      %p189 = scmp.ne.s32.totalorder %s174, %s188
      %p190 = scmp.eq.s32.totalorder %s20, 0
      %p191 = por %p189, %p190
      %s193 = sadd.s32 %s192, 1
      %p196 = scmp.eq.s32.totalorder %s14, 7
      %p197 = scmp.ne.s32.totalorder %s192, %s194
      %p198 = scmp.eq.s32.totalorder %s14, 0
      %p199 = por %p197, %p198
      %p200 = scmp.ne.s32.totalorder %s192, %s194
      %p201 = scmp.eq.s32.totalorder %s19, 7
      %p202 = por %p200, %p201
      %p203 = scmp.ne.s32.totalorder %s194, %s195
      %p204 = scmp.eq.s32.totalorder %s19, 0
      %p205 = por %p203, %p204
      %p206 = scmp.ne.s32.totalorder %s194, %s195
      %p207 = scmp.eq.s32.totalorder %s20, 7
      %p208 = por %p206, %p207
      %p210 = scmp.ne.s32.totalorder %s195, %s209
      %p211 = scmp.eq.s32.totalorder %s20, 0
      %p212 = por %p210, %p211
      %s214 = sadd.s32 %s213, 1
      %p217 = scmp.eq.s32.totalorder %s14, 7
      %p218 = scmp.ne.s32.totalorder %s213, %s215
      %p219 = scmp.eq.s32.totalorder %s14, 0
      %p220 = por %p218, %p219
      %p221 = scmp.ne.s32.totalorder %s213, %s215
      %p222 = scmp.eq.s32.totalorder %s19, 7
      %p223 = por %p221, %p222
      %p224 = scmp.ne.s32.totalorder %s215, %s216
      %p225 = scmp.eq.s32.totalorder %s19, 0
      %p226 = por %p224, %p225
      %p227 = scmp.ne.s32.totalorder %s215, %s216
      %p228 = scmp.eq.s32.totalorder %s20, 7
      %p229 = por %p227, %p228
      %p231 = scmp.ne.s32.totalorder %s216, %s230
      %p232 = scmp.eq.s32.totalorder %s20, 0
      %p233 = por %p231, %p232
      %s234 = ssub.s32 %s21, %s40
      %s235 = ssub.s32 %s22, %s36
      %s236 = sor.u32 %s234, %s235
      %p237 = scmp.eq.s32.totalorder %s236, 0
      %s239 = sadd.s32 %s238, 1
      %s240 = scalar_select %p237, %s238, %s239
      %p243 = pneg %p237
      %p244 = scmp.eq.s32.totalorder %s14, 7
      %p245 = por %p243, %p244
      %p246 = scmp.ne.s32.totalorder %s238, %s241
      %p247 = scmp.eq.s32.totalorder %s14, 0
      %p248 = por %p246, %p247
      %p249 = scmp.ne.s32.totalorder %s238, %s241
      %p250 = scmp.eq.s32.totalorder %s19, 7
      %p251 = por %p249, %p250
      %p252 = scmp.ne.s32.totalorder %s241, %s242
      %p253 = scmp.eq.s32.totalorder %s19, 0
      %p254 = por %p252, %p253
      %p255 = scmp.ne.s32.totalorder %s241, %s242
      %p256 = scmp.eq.s32.totalorder %s20, 7
      %p257 = por %p255, %p256
      %p259 = scmp.ne.s32.totalorder %s242, %s258
      %p260 = scmp.eq.s32.totalorder %s20, 0
      %p261 = por %p259, %p260
      %p262 = scmp.le.s32.totalorder 1, %s14
      %p263 = scmp.lt.s32.totalorder %s14, 9
      %p264 = pnand %p262, %p263
      %p265 = pneg %p264
      // Predicated region
      $region9: #{tpu_custom_call.1} parent=5 // pred_check
        _
      $region10: #{tpu_custom_call.1} parent=5 // pred_check_branch
        %267 = sbr.rel (%p264) target = $region12
      $region11: #{tpu_custom_call.1} parent=5 // pred_region
        %s268 = ssub.s32 %s14, 1
        // Predicated region
        $region13: #{tpu_custom_call.1} parent=11 // pred_check
          %p269 = pneg %p142
        $region14: #{tpu_custom_call.1} parent=11 // pred_check_branch
          %271 = sbr.rel (%p269) target = $region16
        $region15: #{tpu_custom_call.1} parent=11 // pred_region
          _
        $region16: #{tpu_custom_call.1} parent=11 // pred_fallthru
          _
        // Predicated region
        $region17: #{tpu_custom_call.1} parent=11 // pred_check
          %p272 = pneg %p163
        $region18: #{tpu_custom_call.1} parent=11 // pred_check_branch
          %274 = sbr.rel (%p272) target = $region20
        $region19: #{tpu_custom_call.1} parent=11 // pred_region
          _
        $region20: #{tpu_custom_call.1} parent=11 // pred_fallthru
          _
        // Predicated region
        $region21: #{tpu_custom_call.1} parent=11 // pred_check
          %p275 = pneg %p184
        $region22: #{tpu_custom_call.1} parent=11 // pred_check_branch
          %277 = sbr.rel (%p275) target = $region24
        $region23: #{tpu_custom_call.1} parent=11 // pred_region
          _
        $region24: #{tpu_custom_call.1} parent=11 // pred_fallthru
          _
        // Predicated region
        $region25: #{tpu_custom_call.1} parent=11 // pred_check
          %p278 = pneg %p205
        $region26: #{tpu_custom_call.1} parent=11 // pred_check_branch
          %280 = sbr.rel (%p278) target = $region28
        $region27: #{tpu_custom_call.1} parent=11 // pred_region
          _
        $region28: #{tpu_custom_call.1} parent=11 // pred_fallthru
          _
        // Predicated region
        $region29: #{tpu_custom_call.1} parent=11 // pred_check
          %p281 = pneg %p226
        $region30: #{tpu_custom_call.1} parent=11 // pred_check_branch
          %283 = sbr.rel (%p281) target = $region32
        $region31: #{tpu_custom_call.1} parent=11 // pred_region
          _
        $region32: #{tpu_custom_call.1} parent=11 // pred_fallthru
          _
      $region12: #{tpu_custom_call.1} parent=5 // pred_fallthru
        _
      %p284 = scmp.lt.s32.totalorder %s14, 8
      // Predicated region
      $region33: #{tpu_custom_call.1} parent=5 // pred_check
        %p285 = pneg %p284
      $region34: #{tpu_custom_call.1} parent=5 // pred_check_branch
        %287 = sbr.rel (%p285) target = $region36
      $region35: #{tpu_custom_call.1} parent=5 // pred_region
        // Predicated region
        $region37: #{tpu_custom_call.1} parent=35 // pred_check
          %p288 = pneg %p55
        $region38: #{tpu_custom_call.1} parent=35 // pred_check_branch
          %290 = sbr.rel (%p288) target = $region40
        $region39: #{tpu_custom_call.1} parent=35 // pred_region
          %p291 = scmp.lt.s32.totalorder %s21, 1
          %s292 = scalar_select %p291, %s21, 1
          %p293 = scmp.lt.s32.totalorder %s23, 1
          %s294 = scalar_select %p293, %s23, 1
          %s295 = smul.addr %s292, 2
          %s296 = sadd.s32 %s294, %s295
          %s297 = smul.addr %s296, 8
          %s298 = scalar_lea.vmem %s0, %s297
        $region40: #{tpu_custom_call.1} parent=35 // pred_fallthru
          _
        // Predicated region
        $region41: #{tpu_custom_call.1} parent=35 // pred_check
          %p299 = pneg %p85
        $region42: #{tpu_custom_call.1} parent=35 // pred_check_branch
          %301 = sbr.rel (%p299) target = $region44
        $region43: #{tpu_custom_call.1} parent=35 // pred_region
          %s302 = sand.u32 %s75, 1
          %s303 = sand.u32 %s75, 1
          %s304 = smul.addr %s303, 64
          %s305 = scalar_lea.vmem [#allocation2], %s304
          %s306 = smul.u32 8, %s23
          %s307 = smul.addr %s306, 2
          %s308 = sadd.s32 %s22, %s307
          %s309 = smul.addr %s21, 32
          %s310 = sadd.s32 %s308, %s309
          %s311 = smul.addr %s310, 8
          %s312 = scalar_lea.vmem %s1, %s311
          // Predicated region
          $region45: #{tpu_custom_call.1} parent=43 // pred_check
            _
          $region46: #{tpu_custom_call.1} parent=43 // pred_check_branch
            %314 = sbr.rel (0) target = $region48
          $region47: #{tpu_custom_call.1} parent=43 // pred_region
            // Predicated region
            $region49: #{tpu_custom_call.1} parent=47 // pred_check
              _
            $region50: #{tpu_custom_call.1} parent=47 // pred_check_branch
              %316 = sbr.rel (0) target = $region52
            $region51: #{tpu_custom_call.1} parent=47 // pred_region
              // Predicated region
              $region64: #{tpu_custom_call.1} parent=51 // pred_check
                _
              $region65: #{tpu_custom_call.1} parent=51 // pred_check_branch
                %346 = sbr.rel (0) target = $region67
              $region66: #{tpu_custom_call.1} parent=51 // pred_region
                loop: start=0, step=1, limit=1
                $region68: #{tpu_custom_call.1} parent=66 // loop_pre_header
                  _
                $region69: #{tpu_custom_call.1} parent=66 // loop_header
                  %s348 = sphi 0, %s352
                  %p349 = scmp.ge.s32.totalorder %s348, 1
                  %s353 = sphi %s312, %s312
                  %s354 = sphi %s305, %s305
                $region70: #{tpu_custom_call.1} parent=66 // loop_header_branch
                  %351 = sbr.rel (%p349) target = $region74
                $region71: #{tpu_custom_call.1} parent=66 // loop_body
                  %v355 = vld [vmem:[%s353] sm:$0xff]
                  %356 = vst [vmem:[%s354] sm:$0xff] %v355
                  %v357 = vld [vmem:[%s353 + $0x10] sm:$0xff]
                  %358 = vst [vmem:[%s354 + $0x8] sm:$0xff] %v357
                  %v359 = vld [vmem:[%s353 + $0x20] sm:$0xff]
                  %360 = vst [vmem:[%s354 + $0x10] sm:$0xff] %v359
                  %v361 = vld [vmem:[%s353 + $0x30] sm:$0xff]
                  %362 = vst [vmem:[%s354 + $0x18] sm:$0xff] %v361
                  %v363 = vld [vmem:[%s353 + $0x40] sm:$0xff]
                  %364 = vst [vmem:[%s354 + $0x20] sm:$0xff] %v363
                  %v365 = vld [vmem:[%s353 + $0x50] sm:$0xff]
                  %366 = vst [vmem:[%s354 + $0x28] sm:$0xff] %v365
                  %v367 = vld [vmem:[%s353 + $0x60] sm:$0xff]
                  %368 = vst [vmem:[%s354 + $0x30] sm:$0xff] %v367
                  %v369 = vld [vmem:[%s353 + $0x70] sm:$0xff]
                  %370 = vst [vmem:[%s354 + $0x38] sm:$0xff] %v369
                $region72: #{tpu_custom_call.1} parent=66 // loop_footer
                  %s352 = sadd.s32 1, %s348
                $region73: #{tpu_custom_call.1} parent=66 // loop_footer_branch
                  %347 = sbr.rel target = $region69
                $region74: #{tpu_custom_call.1} parent=66 // loop_exit
                  _
              $region67: #{tpu_custom_call.1} parent=51 // pred_fallthru
                _
              // Predicated region
              $region75: #{tpu_custom_call.1} parent=51 // pred_check
                _
              $region76: #{tpu_custom_call.1} parent=51 // pred_check_branch
                %372 = sbr.rel target = $region78
              $region77: #{tpu_custom_call.1} parent=51 // pred_region
                _
              $region78: #{tpu_custom_call.1} parent=51 // pred_fallthru
                _
            $region52: #{tpu_custom_call.1} parent=47 // pred_fallthru
              _
            // Predicated region
            $region53: #{tpu_custom_call.1} parent=47 // pred_check
              _
            $region54: #{tpu_custom_call.1} parent=47 // pred_check_branch
              %318 = sbr.rel target = $region56
            $region55: #{tpu_custom_call.1} parent=47 // pred_region
              %s320 = ssub.s32 256, 1
              loop: start=0, step=1, limit=1
              $region57: #{tpu_custom_call.1} parent=55 // loop_pre_header
                _
              $region58: #{tpu_custom_call.1} parent=55 // loop_header
                %s322 = sphi 0, %s326
                %p323 = scmp.ge.s32.totalorder %s322, 1
                %s327 = sphi %s312, %s312
                %s328 = sphi %s305, %s305
              $region59: #{tpu_custom_call.1} parent=55 // loop_header_branch
                %325 = sbr.rel (%p323) target = $region63
              $region60: #{tpu_custom_call.1} parent=55 // loop_body
                %v329 = vld [vmem:[%s327] sm:%s320]
                %330 = vst [vmem:[%s328] sm:%s320] %v329
                %v331 = vld [vmem:[%s327 + $0x10] sm:%s320]
                %332 = vst [vmem:[%s328 + $0x8] sm:%s320] %v331
                %v333 = vld [vmem:[%s327 + $0x20] sm:%s320]
                %334 = vst [vmem:[%s328 + $0x10] sm:%s320] %v333
                %v335 = vld [vmem:[%s327 + $0x30] sm:%s320]
                %336 = vst [vmem:[%s328 + $0x18] sm:%s320] %v335
                %v337 = vld [vmem:[%s327 + $0x40] sm:%s320]
                %338 = vst [vmem:[%s328 + $0x20] sm:%s320] %v337
                %v339 = vld [vmem:[%s327 + $0x50] sm:%s320]
                %340 = vst [vmem:[%s328 + $0x28] sm:%s320] %v339
                %v341 = vld [vmem:[%s327 + $0x60] sm:%s320]
                %342 = vst [vmem:[%s328 + $0x30] sm:%s320] %v341
                %v343 = vld [vmem:[%s327 + $0x70] sm:%s320]
                %344 = vst [vmem:[%s328 + $0x38] sm:%s320] %v343
              $region61: #{tpu_custom_call.1} parent=55 // loop_footer
                %s326 = sadd.s32 1, %s322
              $region62: #{tpu_custom_call.1} parent=55 // loop_footer_branch
                %321 = sbr.rel target = $region58
              $region63: #{tpu_custom_call.1} parent=55 // loop_exit
                _
            $region56: #{tpu_custom_call.1} parent=47 // pred_fallthru
              _
          $region48: #{tpu_custom_call.1} parent=43 // pred_fallthru
            _
          %373 = vnop
        $region44: #{tpu_custom_call.1} parent=35 // pred_fallthru
          _
        // Predicated region
        $region79: #{tpu_custom_call.1} parent=35 // pred_check
          %p374 = pneg %p115
        $region80: #{tpu_custom_call.1} parent=35 // pred_check_branch
          %376 = sbr.rel (%p374) target = $region82
        $region81: #{tpu_custom_call.1} parent=35 // pred_region
          %s377 = sand.u32 %s105, 1
          %s378 = sand.u32 %s105, 1
          %s379 = smul.addr %s378, 64
          %s380 = scalar_lea.vmem [#allocation3], %s379
          %s381 = smul.u32 8, %s23
          %s382 = smul.addr %s381, 2
          %s383 = sadd.s32 %s22, %s382
          %s384 = smul.addr %s21, 32
          %s385 = sadd.s32 %s383, %s384
          %s386 = smul.addr %s385, 8
          %s387 = scalar_lea.vmem %s2, %s386
          // Predicated region
          $region83: #{tpu_custom_call.1} parent=81 // pred_check
            _
          $region84: #{tpu_custom_call.1} parent=81 // pred_check_branch
            %389 = sbr.rel (0) target = $region86
          $region85: #{tpu_custom_call.1} parent=81 // pred_region
            // Predicated region
            $region87: #{tpu_custom_call.1} parent=85 // pred_check
              _
            $region88: #{tpu_custom_call.1} parent=85 // pred_check_branch
              %391 = sbr.rel (0) target = $region90
            $region89: #{tpu_custom_call.1} parent=85 // pred_region
              // Predicated region
              $region102: #{tpu_custom_call.1} parent=89 // pred_check
                _
              $region103: #{tpu_custom_call.1} parent=89 // pred_check_branch
                %421 = sbr.rel (0) target = $region105
              $region104: #{tpu_custom_call.1} parent=89 // pred_region
                loop: start=0, step=1, limit=1
                $region106: #{tpu_custom_call.1} parent=104 // loop_pre_header
                  _
                $region107: #{tpu_custom_call.1} parent=104 // loop_header
                  %s423 = sphi 0, %s427
                  %p424 = scmp.ge.s32.totalorder %s423, 1
                  %s428 = sphi %s387, %s387
                  %s429 = sphi %s380, %s380
                $region108: #{tpu_custom_call.1} parent=104 // loop_header_branch
                  %426 = sbr.rel (%p424) target = $region112
                $region109: #{tpu_custom_call.1} parent=104 // loop_body
                  %v430 = vld [vmem:[%s428] sm:$0xff]
                  %431 = vst [vmem:[%s429] sm:$0xff] %v430
                  %v432 = vld [vmem:[%s428 + $0x10] sm:$0xff]
                  %433 = vst [vmem:[%s429 + $0x8] sm:$0xff] %v432
                  %v434 = vld [vmem:[%s428 + $0x20] sm:$0xff]
                  %435 = vst [vmem:[%s429 + $0x10] sm:$0xff] %v434
                  %v436 = vld [vmem:[%s428 + $0x30] sm:$0xff]
                  %437 = vst [vmem:[%s429 + $0x18] sm:$0xff] %v436
                  %v438 = vld [vmem:[%s428 + $0x40] sm:$0xff]
                  %439 = vst [vmem:[%s429 + $0x20] sm:$0xff] %v438
                  %v440 = vld [vmem:[%s428 + $0x50] sm:$0xff]
                  %441 = vst [vmem:[%s429 + $0x28] sm:$0xff] %v440
                  %v442 = vld [vmem:[%s428 + $0x60] sm:$0xff]
                  %443 = vst [vmem:[%s429 + $0x30] sm:$0xff] %v442
                  %v444 = vld [vmem:[%s428 + $0x70] sm:$0xff]
                  %445 = vst [vmem:[%s429 + $0x38] sm:$0xff] %v444
                $region110: #{tpu_custom_call.1} parent=104 // loop_footer
                  %s427 = sadd.s32 1, %s423
                $region111: #{tpu_custom_call.1} parent=104 // loop_footer_branch
                  %422 = sbr.rel target = $region107
                $region112: #{tpu_custom_call.1} parent=104 // loop_exit
                  _
              $region105: #{tpu_custom_call.1} parent=89 // pred_fallthru
                _
              // Predicated region
              $region113: #{tpu_custom_call.1} parent=89 // pred_check
                _
              $region114: #{tpu_custom_call.1} parent=89 // pred_check_branch
                %447 = sbr.rel target = $region116
              $region115: #{tpu_custom_call.1} parent=89 // pred_region
                _
              $region116: #{tpu_custom_call.1} parent=89 // pred_fallthru
                _
            $region90: #{tpu_custom_call.1} parent=85 // pred_fallthru
              _
            // Predicated region
            $region91: #{tpu_custom_call.1} parent=85 // pred_check
              _
            $region92: #{tpu_custom_call.1} parent=85 // pred_check_branch
              %393 = sbr.rel target = $region94
            $region93: #{tpu_custom_call.1} parent=85 // pred_region
              %s395 = ssub.s32 256, 1
              loop: start=0, step=1, limit=1
              $region95: #{tpu_custom_call.1} parent=93 // loop_pre_header
                _
              $region96: #{tpu_custom_call.1} parent=93 // loop_header
                %s397 = sphi 0, %s401
                %p398 = scmp.ge.s32.totalorder %s397, 1
                %s402 = sphi %s387, %s387
                %s403 = sphi %s380, %s380
              $region97: #{tpu_custom_call.1} parent=93 // loop_header_branch
                %400 = sbr.rel (%p398) target = $region101
              $region98: #{tpu_custom_call.1} parent=93 // loop_body
                %v404 = vld [vmem:[%s402] sm:%s395]
                %405 = vst [vmem:[%s403] sm:%s395] %v404
                %v406 = vld [vmem:[%s402 + $0x10] sm:%s395]
                %407 = vst [vmem:[%s403 + $0x8] sm:%s395] %v406
                %v408 = vld [vmem:[%s402 + $0x20] sm:%s395]
                %409 = vst [vmem:[%s403 + $0x10] sm:%s395] %v408
                %v410 = vld [vmem:[%s402 + $0x30] sm:%s395]
                %411 = vst [vmem:[%s403 + $0x18] sm:%s395] %v410
                %v412 = vld [vmem:[%s402 + $0x40] sm:%s395]
                %413 = vst [vmem:[%s403 + $0x20] sm:%s395] %v412
                %v414 = vld [vmem:[%s402 + $0x50] sm:%s395]
                %415 = vst [vmem:[%s403 + $0x28] sm:%s395] %v414
                %v416 = vld [vmem:[%s402 + $0x60] sm:%s395]
                %417 = vst [vmem:[%s403 + $0x30] sm:%s395] %v416
                %v418 = vld [vmem:[%s402 + $0x70] sm:%s395]
                %419 = vst [vmem:[%s403 + $0x38] sm:%s395] %v418
              $region99: #{tpu_custom_call.1} parent=93 // loop_footer
                %s401 = sadd.s32 1, %s397
              $region100: #{tpu_custom_call.1} parent=93 // loop_footer_branch
                %396 = sbr.rel target = $region96
              $region101: #{tpu_custom_call.1} parent=93 // loop_exit
                _
            $region94: #{tpu_custom_call.1} parent=85 // pred_fallthru
              _
          $region86: #{tpu_custom_call.1} parent=81 // pred_fallthru
            _
          %448 = vnop
        $region82: #{tpu_custom_call.1} parent=35 // pred_fallthru
          _
      $region36: #{tpu_custom_call.1} parent=5 // pred_fallthru
        _
      %p449 = scmp.le.s32.totalorder 1, %s14
      %p450 = scmp.lt.s32.totalorder %s14, 9
      %p451 = pnand %p449, %p450
      %p452 = pneg %p451
      // Predicated region
      $region117: #{tpu_custom_call.1} parent=5 // pred_check
        _
      $region118: #{tpu_custom_call.1} parent=5 // pred_check_branch
        %454 = sbr.rel (%p451) target = $region120
      $region119: #{tpu_custom_call.1} parent=5 // pred_region
        %s455 = ssub.s32 %s14, 1
        %s456 = sand.u32 %s78, 1
        %s457 = sand.u32 %s78, 1
        %s458 = smul.addr %s457, 64
        %s459 = scalar_lea.vmem [#allocation2], %s458
        // Predicated region
        $region121: #{tpu_custom_call.1} parent=119 // pred_check
          %p460 = pneg %p91
        $region122: #{tpu_custom_call.1} parent=119 // pred_check_branch
          %462 = sbr.rel (%p460) target = $region124
        $region123: #{tpu_custom_call.1} parent=119 // pred_region
          _
        $region124: #{tpu_custom_call.1} parent=119 // pred_fallthru
          _
        %s463 = sand.u32 %s108, 1
        %s464 = sand.u32 %s108, 1
        %s465 = smul.addr %s464, 64
        %s466 = scalar_lea.vmem [#allocation3], %s465
        // Predicated region
        $region125: #{tpu_custom_call.1} parent=119 // pred_check
          %p467 = pneg %p121
        $region126: #{tpu_custom_call.1} parent=119 // pred_check_branch
          %469 = sbr.rel (%p467) target = $region128
        $region127: #{tpu_custom_call.1} parent=119 // pred_region
          _
        $region128: #{tpu_custom_call.1} parent=119 // pred_fallthru
          _
        %p470 = scmp.lt.s32.totalorder %s24, 1
        %s471 = scalar_select %p470, %s24, 1
        %p472 = scmp.lt.s32.totalorder %s26, 1
        %s473 = scalar_select %p472, %s26, 1
        %s474 = smul.addr %s471, 2
        %s475 = sadd.s32 %s473, %s474
        %s476 = smul.addr %s475, 8
        %s477 = scalar_lea.vmem %s0, %s476
        %p478 = pneg %p61
        %p479 = pneg %p58
        %s480 = sand.u32 %s78, 1
        %s481 = sand.u32 %s78, 1
        %s482 = smul.addr %s481, 64
        %s483 = scalar_lea.vmem [#allocation2], %s482
        %p484 = pneg %p91
        %p485 = pneg %p88
        %s486 = sand.u32 %s108, 1
        %s487 = sand.u32 %s108, 1
        %s488 = smul.addr %s487, 64
        %s489 = scalar_lea.vmem [#allocation3], %s488
        %p490 = pneg %p121
        %p491 = pneg %p118
        %p492 = pneg %p142
        %p493 = pneg %p139
        %p494 = pneg %p163
        %p495 = pneg %p160
        %p496 = pneg %p184
        %p497 = pneg %p181
        %p498 = pneg %p205
        %p499 = pneg %p202
        %p500 = pneg %p226
        %p501 = pneg %p223
        %p502 = pneg %p254
        %p503 = pneg %p251
        %p504 = scmp.lt.s32.totalorder %s24, 1
        %s505 = scalar_select %p504, %s24, 1
        %p506 = scmp.lt.s32.totalorder %s25, 1
        %s507 = scalar_select %p506, %s25, 1
        %s508 = smul.addr %s505, 2
        %s509 = sadd.s32 %s507, %s508
        %s510 = smul.addr %s509, 8
        %s511 = scalar_lea.vmem %s8, %s510
        %p512 = scmp.lt.s32.totalorder %s24, 1
        %s513 = scalar_select %p512, %s24, 1
        %p514 = scmp.lt.s32.totalorder %s26, 1
        %s515 = scalar_select %p514, %s26, 1
        %s516 = smul.addr %s513, 2
        %s517 = sadd.s32 %s515, %s516
        %s518 = smul.addr %s517, 8
        %s519 = scalar_lea.vmem %s0, %s518
        %s520 = smul.u32 8, %s26
        %s521 = smul.u32 8, %s26
        %p522 = scmp.lt.s32.totalorder %s24, 1
        %s523 = scalar_select %p522, %s24, 1
        %p524 = scmp.lt.s32.totalorder %s25, 1
        %s525 = scalar_select %p524, %s25, 1
        %s526 = smul.addr %s523, 2
        %s527 = sadd.s32 %s525, %s526
        %s528 = smul.addr %s527, 8
        %s529 = scalar_lea.vmem %s8, %s528
        %v530 = vld [vmem:[%s466] sm:$0xff]
        %v531 = vld [vmem:[%s466 + $0x8] sm:$0xff]
        %v532 = vld [vmem:[%s466 + $0x10] sm:$0xff]
        %v533 = vld [vmem:[%s466 + $0x18] sm:$0xff]
        %v534 = vld [vmem:[%s466 + $0x20] sm:$0xff]
        %v535 = vld [vmem:[%s466 + $0x28] sm:$0xff]
        %v536 = vld [vmem:[%s466 + $0x30] sm:$0xff]
        %v537 = vld [vmem:[%s466 + $0x38] sm:$0xff]
        %v538 = vld [vmem:[%s3] sm:$0xf]
        %v539 = vld [vmem:[%s4] sm:$0x1]
        %v541 = vlaneseq
        %v542 = vshrl.u32 %v541, 7
        %v543 = vsub.s32 0, %v542
        %v544 = vrot.slane %v539, %v543
        %vm546 = vcmask 31744
        %v548 = vsel %vm546, %v530, 0
        %v551 = vsel %vm546, %v531, 0
        %v554 = vsel %vm546, %v532, 0
        %v557 = vsel %vm546, %v533, 0
        %v560 = vsel %vm546, %v534, 0
        %v563 = vsel %vm546, %v535, 0
        %v566 = vsel %vm546, %v536, 0
        %v569 = vsel %vm546, %v537, 0
        %vm571 = vcmask 1043456
        %v573 = vsel %vm571, %v538, 0
        %575 = vmatprep.subr.mxu0 0.0
        %576 = vmatpush1.msra.mxu0 0.0
        %577 = vmatprep.subr.mxu0 0.0
        %578 = vmatpush1.msra.mxu0 0.0
        %579 = vmatprep.subr.mxu0 0.0
        %580 = vmatpush1.msra.mxu0 0.0
        %581 = vmatprep.subr.mxu0 0.0
        %582 = vmatpush1.msra.mxu0 0.0
        %583 = vmatprep.subr.mxu0 0.0
        %584 = vmatpush1.msra.mxu0 0.0
        %585 = vmatprep.subr.mxu0 0.0
        %586 = vmatpush1.msra.mxu0 0.0
        %587 = vmatprep.subr.mxu0 0.0
        %588 = vmatpush1.msra.mxu0 0.0
        %589 = vmatprep.subr.mxu0 0.0
        %590 = vmatpush1.msra.mxu0 0.0
        %591 = vmatprep.subr.mxu0 0.0
        %592 = vmatpush1.msra.mxu0 0.0
        %593 = vmatprep.subr.mxu0 0.0
        %594 = vmatpush1.msra.mxu0 0.0
        %595 = vmatprep.subr.mxu0 0.0
        %596 = vmatpush1.msra.mxu0 0.0
        %597 = vmatprep.subr.mxu0 0.0
        %598 = vmatpush1.msra.mxu0 0.0
        %599 = vmatprep.subr.mxu0 0.0
        %600 = vmatpush1.msra.mxu0 0.0
        %601 = vmatprep.subr.mxu0 0.0
        %602 = vmatpush1.msra.mxu0 0.0
        %603 = vmatprep.subr.mxu0 0.0
        %604 = vmatpush1.msra.mxu0 0.0
        %605 = vmatprep.subr.mxu0 0.0
        %606 = vmatpush1.msra.mxu0 %v573
        %607 = vmatprep.subr.mxu0 0.0
        %608 = vmatpush2.msra.mxu0 0.0
        %609 = vmatprep.subr.mxu0 0.0
        %610 = vmatpush2.msra.mxu0 0.0
        %611 = vmatprep.subr.mxu0 0.0
        %612 = vmatpush2.msra.mxu0 0.0
        %613 = vmatprep.subr.mxu0 0.0
        %614 = vmatpush2.msra.mxu0 0.0
        %615 = vmatprep.subr.mxu0 0.0
        %616 = vmatpush2.msra.mxu0 0.0
        %617 = vmatprep.subr.mxu0 0.0
        %618 = vmatpush2.msra.mxu0 0.0
        %619 = vmatprep.subr.mxu0 0.0
        %620 = vmatpush2.msra.mxu0 0.0
        %621 = vmatprep.subr.mxu0 0.0
        %622 = vmatpush2.msra.mxu0 0.0
        %623 = vmatprep.subr.mxu0 0.0
        %624 = vmatpush2.msra.mxu0 0.0
        %625 = vmatprep.subr.mxu0 0.0
        %626 = vmatpush2.msra.mxu0 0.0
        %627 = vmatprep.subr.mxu0 0.0
        %628 = vmatpush2.msra.mxu0 0.0
        %629 = vmatprep.subr.mxu0 0.0
        %630 = vmatpush2.msra.mxu0 0.0
        %631 = vmatprep.subr.mxu0 0.0
        %632 = vmatpush2.msra.mxu0 0.0
        %633 = vmatprep.subr.mxu0 0.0
        %634 = vmatpush2.msra.mxu0 0.0
        %635 = vmatprep.subr.mxu0 0.0
        %636 = vmatpush2.msra.mxu0 0.0
        %637 = vmatprep.subr.mxu0 0.0
        %638 = vmatpush2.msra.mxu0 0.0
        %639 = vmatprep.mubr.f32.mxu0 0.0
        %640 = vmatmul.mubr.f32.gmra.mxu0 %v548
        %v641 = vpop.f32.mrf.mxu0
        %v642 = vadd.f32 %v544, %v641
        %v643 = vpop.f32.mrf.mxu0
        %644 = vmatprep.mubr.f32.mxu0 0.0
        %645 = vmatmul.mubr.f32.gmra.mxu0 %v551
        %v646 = vpop.f32.mrf.mxu0
        %v647 = vadd.f32 %v544, %v646
        %v648 = vpop.f32.mrf.mxu0
        %649 = vmatprep.mubr.f32.mxu0 0.0
        %650 = vmatmul.mubr.f32.gmra.mxu0 %v554
        %v651 = vpop.f32.mrf.mxu0
        %v652 = vadd.f32 %v544, %v651
        %v653 = vpop.f32.mrf.mxu0
        %654 = vmatprep.mubr.f32.mxu0 0.0
        %655 = vmatmul.mubr.f32.gmra.mxu0 %v557
        %v656 = vpop.f32.mrf.mxu0
        %v657 = vadd.f32 %v544, %v656
        %v658 = vpop.f32.mrf.mxu0
        %659 = vmatprep.mubr.f32.mxu0 0.0
        %660 = vmatmul.mubr.f32.gmra.mxu0 %v560
        %v661 = vpop.f32.mrf.mxu0
        %v662 = vadd.f32 %v544, %v661
        %v663 = vpop.f32.mrf.mxu0
        %664 = vmatprep.mubr.f32.mxu0 0.0
        %665 = vmatmul.mubr.f32.gmra.mxu0 %v563
        %v666 = vpop.f32.mrf.mxu0
        %v667 = vadd.f32 %v544, %v666
        %v668 = vpop.f32.mrf.mxu0
        %669 = vmatprep.mubr.f32.mxu0 0.0
        %670 = vmatmul.mubr.f32.gmra.mxu0 %v566
        %v671 = vpop.f32.mrf.mxu0
        %v672 = vadd.f32 %v544, %v671
        %v673 = vpop.f32.mrf.mxu0
        %674 = vmatprep.mubr.f32.mxu0 0.0
        %675 = vmatmul.mubr.f32.gmra.mxu0 %v569
        %v676 = vpop.f32.mrf.mxu0
        %v677 = vadd.f32 %v544, %v676
        %v678 = vpop.f32.mrf.mxu0
        %679 = vdwg.mxu0
        %v680 = vmax.f32 %v642, 0.0
        %v681 = vmax.f32 %v647, 0.0
        %v682 = vmax.f32 %v652, 0.0
        %v683 = vmax.f32 %v657, 0.0
        %v684 = vmax.f32 %v662, 0.0
        %v685 = vmax.f32 %v667, 0.0
        %v686 = vmax.f32 %v672, 0.0
        %v687 = vmax.f32 %v677, 0.0
        %v688 = vld [vmem:[%s519] sm:$0xff]
        %v690 = vcombine.high %v688, %v688
        %v692 = vunpack.c.l.s4 1966171168
        %v693 = vunpack.c.0.s8 %v692
        %v694 = vlaneseq
        %v695 = vshrl.u32 %v694, 7
        %v696 = vsub.s32 %v693, %v695
        %v697 = vrot.slane %v688, %v696
        %v699 = vunpack.c.l.s4 1966171168
        %v700 = vunpack.c.0.s8 %v699
        %v701 = vlaneseq
        %v702 = vshrl.u32 %v701, 7
        %v703 = vsub.s32 %v700, %v702
        %v704 = vrot.slane %v690, %v703
        %v705 = vcombine.high %v697, %v697
        %v706 = vcombine.high %v704, %v704
        %v708 = vunpack.c.l.s4 1966171168
        %v709 = vunpack.c.0.s8 %v708
        %v710 = vlaneseq
        %v711 = vshrl.u32 %v710, 7
        %v712 = vsub.s32 %v709, %v711
        %v713 = vrot.slane %v697, %v712
        %v715 = vunpack.c.l.s4 1966171168
        %v716 = vunpack.c.0.s8 %v715
        %v717 = vlaneseq
        %v718 = vshrl.u32 %v717, 7
        %v719 = vsub.s32 %v716, %v718
        %v720 = vrot.slane %v704, %v719
        %v722 = vunpack.c.l.s4 1966171168
        %v723 = vunpack.c.0.s8 %v722
        %v724 = vlaneseq
        %v725 = vshrl.u32 %v724, 7
        %v726 = vsub.s32 %v723, %v725
        %v727 = vrot.slane %v705, %v726
        %v729 = vunpack.c.l.s4 1966171168
        %v730 = vunpack.c.0.s8 %v729
        %v731 = vlaneseq
        %v732 = vshrl.u32 %v731, 7
        %v733 = vsub.s32 %v730, %v732
        %v734 = vrot.slane %v706, %v733
        %v735 = vcombine.high %v713, %v713
        %v736 = vcombine.high %v720, %v720
        %v737 = vcombine.high %v727, %v727
        %v738 = vcombine.high %v734, %v734
        %v739 = vld [vmem:[%s5] sm:$0xff]
        %v740 = vld [vmem:[%s5 + $0x8] sm:$0xff]
        %v741 = vld [vmem:[%s5 + $0x10] sm:$0xff]
        %v742 = vld [vmem:[%s5 + $0x18] sm:$0xff]
        %v743 = vlaneseq
        %v744 = vshrl.u32 %v743, 7
        %v745 = vsub.s32 0, %v744
        %v746 = vrot.slane %v713, %v745
        %v747 = vlaneseq
        %v748 = vshrl.u32 %v747, 7
        %v749 = vsub.s32 0, %v748
        %v750 = vrot.slane %v727, %v749
        %v751 = vlaneseq
        %v752 = vshrl.u32 %v751, 7
        %v753 = vsub.s32 0, %v752
        %v754 = vrot.slane %v735, %v753
        %v755 = vlaneseq
        %v756 = vshrl.u32 %v755, 7
        %v757 = vsub.s32 0, %v756
        %v758 = vrot.slane %v737, %v757
        %v759 = vlaneseq
        %v760 = vshrl.u32 %v759, 7
        %v761 = vsub.s32 0, %v760
        %v762 = vrot.slane %v720, %v761
        %v763 = vlaneseq
        %v764 = vshrl.u32 %v763, 7
        %v765 = vsub.s32 0, %v764
        %v766 = vrot.slane %v734, %v765
        %v767 = vlaneseq
        %v768 = vshrl.u32 %v767, 7
        %v769 = vsub.s32 0, %v768
        %v770 = vrot.slane %v736, %v769
        %v771 = vlaneseq
        %v772 = vshrl.u32 %v771, 7
        %v773 = vsub.s32 0, %v772
        %v774 = vrot.slane %v738, %v773
        %775 = vset.pattern.permute.xlu0 0
        %776 = vperm.xlu0 %775, %v746
        %v777 = vpop.permute.xlu0 %776
        %779 = vset.pattern.permute.xlu0 0
        %780 = vperm.xlu0 %779, %v750
        %v781 = vpop.permute.xlu0 %780
        %783 = vset.pattern.permute.xlu0 0
        %784 = vperm.xlu0 %783, %v754
        %v785 = vpop.permute.xlu0 %784
        %787 = vset.pattern.permute.xlu0 0
        %788 = vperm.xlu0 %787, %v758
        %v789 = vpop.permute.xlu0 %788
        %791 = vset.pattern.permute.xlu0 0
        %792 = vperm.xlu0 %791, %v762
        %v793 = vpop.permute.xlu0 %792
        %795 = vset.pattern.permute.xlu0 0
        %796 = vperm.xlu0 %795, %v766
        %v797 = vpop.permute.xlu0 %796
        %799 = vset.pattern.permute.xlu0 0
        %800 = vperm.xlu0 %799, %v770
        %v801 = vpop.permute.xlu0 %800
        %803 = vset.pattern.permute.xlu0 0
        %804 = vperm.xlu0 %803, %v774
        %v805 = vpop.permute.xlu0 %804
        %v807 = vmul.f32 %v777, %v739
        %v808 = vmul.f32 %v777, %v740
        %v809 = vmul.f32 %v777, %v741
        %v810 = vmul.f32 %v777, %v742
        %v811 = vmul.f32 %v781, %v739
        %v812 = vmul.f32 %v781, %v740
        %v813 = vmul.f32 %v781, %v741
        %v814 = vmul.f32 %v781, %v742
        %v815 = vmul.f32 %v785, %v739
        %v816 = vmul.f32 %v785, %v740
        %v817 = vmul.f32 %v785, %v741
        %v818 = vmul.f32 %v785, %v742
        %v819 = vmul.f32 %v789, %v739
        %v820 = vmul.f32 %v789, %v740
        %v821 = vmul.f32 %v789, %v741
        %v822 = vmul.f32 %v789, %v742
        %v823 = vmul.f32 %v793, %v739
        %v824 = vmul.f32 %v793, %v740
        %v825 = vmul.f32 %v793, %v741
        %v826 = vmul.f32 %v793, %v742
        %v827 = vmul.f32 %v797, %v739
        %v828 = vmul.f32 %v797, %v740
        %v829 = vmul.f32 %v797, %v741
        %v830 = vmul.f32 %v797, %v742
        %v831 = vmul.f32 %v801, %v739
        %v832 = vmul.f32 %v801, %v740
        %v833 = vmul.f32 %v801, %v741
        %v834 = vmul.f32 %v801, %v742
        %v835 = vmul.f32 %v805, %v739
        %v836 = vmul.f32 %v805, %v740
        %v837 = vmul.f32 %v805, %v741
        %v838 = vmul.f32 %v805, %v742
        %s839 = scalar_lea.vmem %s5, 32
        %v840 = vld [vmem:[%s839] sm:$0xff]
        %v841 = vld [vmem:[%s839 + $0x8] sm:$0xff]
        %v842 = vld [vmem:[%s839 + $0x10] sm:$0xff]
        %v843 = vld [vmem:[%s839 + $0x18] sm:$0xff]
        %844 = vset.pattern.permute.xlu0 1
        %845 = vperm.xlu0 %844, %v746
        %v846 = vpop.permute.xlu0 %845
        %848 = vset.pattern.permute.xlu0 1
        %849 = vperm.xlu0 %848, %v750
        %v850 = vpop.permute.xlu0 %849
        %852 = vset.pattern.permute.xlu0 1
        %853 = vperm.xlu0 %852, %v754
        %v854 = vpop.permute.xlu0 %853
        %856 = vset.pattern.permute.xlu0 1
        %857 = vperm.xlu0 %856, %v758
        %v858 = vpop.permute.xlu0 %857
        %860 = vset.pattern.permute.xlu0 1
        %861 = vperm.xlu0 %860, %v762
        %v862 = vpop.permute.xlu0 %861
        %864 = vset.pattern.permute.xlu0 1
        %865 = vperm.xlu0 %864, %v766
        %v866 = vpop.permute.xlu0 %865
        %868 = vset.pattern.permute.xlu0 1
        %869 = vperm.xlu0 %868, %v770
        %v870 = vpop.permute.xlu0 %869
        %872 = vset.pattern.permute.xlu0 1
        %873 = vperm.xlu0 %872, %v774
        %v874 = vpop.permute.xlu0 %873
        %v876 = vmul.f32 %v846, %v840
        %v877 = vmul.f32 %v846, %v841
        %v878 = vmul.f32 %v846, %v842
        %v879 = vmul.f32 %v846, %v843
        %v880 = vmul.f32 %v850, %v840
        %v881 = vmul.f32 %v850, %v841
        %v882 = vmul.f32 %v850, %v842
        %v883 = vmul.f32 %v850, %v843
        %v884 = vmul.f32 %v854, %v840
        %v885 = vmul.f32 %v854, %v841
        %v886 = vmul.f32 %v854, %v842
        %v887 = vmul.f32 %v854, %v843
        %v888 = vmul.f32 %v858, %v840
        %v889 = vmul.f32 %v858, %v841
        %v890 = vmul.f32 %v858, %v842
        %v891 = vmul.f32 %v858, %v843
        %v892 = vmul.f32 %v862, %v840
        %v893 = vmul.f32 %v862, %v841
        %v894 = vmul.f32 %v862, %v842
        %v895 = vmul.f32 %v862, %v843
        %v896 = vmul.f32 %v866, %v840
        %v897 = vmul.f32 %v866, %v841
        %v898 = vmul.f32 %v866, %v842
        %v899 = vmul.f32 %v866, %v843
        %v900 = vmul.f32 %v870, %v840
        %v901 = vmul.f32 %v870, %v841
        %v902 = vmul.f32 %v870, %v842
        %v903 = vmul.f32 %v870, %v843
        %v904 = vmul.f32 %v874, %v840
        %v905 = vmul.f32 %v874, %v841
        %v906 = vmul.f32 %v874, %v842
        %v907 = vmul.f32 %v874, %v843
        %v908 = vadd.f32 %v807, %v876
        %v909 = vadd.f32 %v808, %v877
        %v910 = vadd.f32 %v809, %v878
        %v911 = vadd.f32 %v810, %v879
        %v912 = vadd.f32 %v811, %v880
        %v913 = vadd.f32 %v812, %v881
        %v914 = vadd.f32 %v813, %v882
        %v915 = vadd.f32 %v814, %v883
        %v916 = vadd.f32 %v815, %v884
        %v917 = vadd.f32 %v816, %v885
        %v918 = vadd.f32 %v817, %v886
        %v919 = vadd.f32 %v818, %v887
        %v920 = vadd.f32 %v819, %v888
        %v921 = vadd.f32 %v820, %v889
        %v922 = vadd.f32 %v821, %v890
        %v923 = vadd.f32 %v822, %v891
        %v924 = vadd.f32 %v823, %v892
        %v925 = vadd.f32 %v824, %v893
        %v926 = vadd.f32 %v825, %v894
        %v927 = vadd.f32 %v826, %v895
        %v928 = vadd.f32 %v827, %v896
        %v929 = vadd.f32 %v828, %v897
        %v930 = vadd.f32 %v829, %v898
        %v931 = vadd.f32 %v830, %v899
        %v932 = vadd.f32 %v831, %v900
        %v933 = vadd.f32 %v832, %v901
        %v934 = vadd.f32 %v833, %v902
        %v935 = vadd.f32 %v834, %v903
        %v936 = vadd.f32 %v835, %v904
        %v937 = vadd.f32 %v836, %v905
        %v938 = vadd.f32 %v837, %v906
        %v939 = vadd.f32 %v838, %v907
        %s940 = scalar_lea.vmem %s5, 64
        %v941 = vld [vmem:[%s940] sm:$0xff]
        %v942 = vld [vmem:[%s940 + $0x8] sm:$0xff]
        %v943 = vld [vmem:[%s940 + $0x10] sm:$0xff]
        %v944 = vld [vmem:[%s940 + $0x18] sm:$0xff]
        %945 = vset.pattern.permute.xlu0 2
        %946 = vperm.xlu0 %945, %v746
        %v947 = vpop.permute.xlu0 %946
        %949 = vset.pattern.permute.xlu0 2
        %950 = vperm.xlu0 %949, %v750
        %v951 = vpop.permute.xlu0 %950
        %953 = vset.pattern.permute.xlu0 2
        %954 = vperm.xlu0 %953, %v754
        %v955 = vpop.permute.xlu0 %954
        %957 = vset.pattern.permute.xlu0 2
        %958 = vperm.xlu0 %957, %v758
        %v959 = vpop.permute.xlu0 %958
        %961 = vset.pattern.permute.xlu0 2
        %962 = vperm.xlu0 %961, %v762
        %v963 = vpop.permute.xlu0 %962
        %965 = vset.pattern.permute.xlu0 2
        %966 = vperm.xlu0 %965, %v766
        %v967 = vpop.permute.xlu0 %966
        %969 = vset.pattern.permute.xlu0 2
        %970 = vperm.xlu0 %969, %v770
        %v971 = vpop.permute.xlu0 %970
        %973 = vset.pattern.permute.xlu0 2
        %974 = vperm.xlu0 %973, %v774
        %v975 = vpop.permute.xlu0 %974
        %v977 = vmul.f32 %v947, %v941
        %v978 = vmul.f32 %v947, %v942
        %v979 = vmul.f32 %v947, %v943
        %v980 = vmul.f32 %v947, %v944
        %v981 = vmul.f32 %v951, %v941
        %v982 = vmul.f32 %v951, %v942
        %v983 = vmul.f32 %v951, %v943
        %v984 = vmul.f32 %v951, %v944
        %v985 = vmul.f32 %v955, %v941
        %v986 = vmul.f32 %v955, %v942
        %v987 = vmul.f32 %v955, %v943
        %v988 = vmul.f32 %v955, %v944
        %v989 = vmul.f32 %v959, %v941
        %v990 = vmul.f32 %v959, %v942
        %v991 = vmul.f32 %v959, %v943
        %v992 = vmul.f32 %v959, %v944
        %v993 = vmul.f32 %v963, %v941
        %v994 = vmul.f32 %v963, %v942
        %v995 = vmul.f32 %v963, %v943
        %v996 = vmul.f32 %v963, %v944
        %v997 = vmul.f32 %v967, %v941
        %v998 = vmul.f32 %v967, %v942
        %v999 = vmul.f32 %v967, %v943
        %v1000 = vmul.f32 %v967, %v944
        %v1001 = vmul.f32 %v971, %v941
        %v1002 = vmul.f32 %v971, %v942
        %v1003 = vmul.f32 %v971, %v943
        %v1004 = vmul.f32 %v971, %v944
        %v1005 = vmul.f32 %v975, %v941
        %v1006 = vmul.f32 %v975, %v942
        %v1007 = vmul.f32 %v975, %v943
        %v1008 = vmul.f32 %v975, %v944
        %v1009 = vadd.f32 %v908, %v977
        %v1010 = vadd.f32 %v909, %v978
        %v1011 = vadd.f32 %v910, %v979
        %v1012 = vadd.f32 %v911, %v980
        %v1013 = vadd.f32 %v912, %v981
        %v1014 = vadd.f32 %v913, %v982
        %v1015 = vadd.f32 %v914, %v983
        %v1016 = vadd.f32 %v915, %v984
        %v1017 = vadd.f32 %v916, %v985
        %v1018 = vadd.f32 %v917, %v986
        %v1019 = vadd.f32 %v918, %v987
        %v1020 = vadd.f32 %v919, %v988
        %v1021 = vadd.f32 %v920, %v989
        %v1022 = vadd.f32 %v921, %v990
        %v1023 = vadd.f32 %v922, %v991
        %v1024 = vadd.f32 %v923, %v992
        %v1025 = vadd.f32 %v924, %v993
        %v1026 = vadd.f32 %v925, %v994
        %v1027 = vadd.f32 %v926, %v995
        %v1028 = vadd.f32 %v927, %v996
        %v1029 = vadd.f32 %v928, %v997
        %v1030 = vadd.f32 %v929, %v998
        %v1031 = vadd.f32 %v930, %v999
        %v1032 = vadd.f32 %v931, %v1000
        %v1033 = vadd.f32 %v932, %v1001
        %v1034 = vadd.f32 %v933, %v1002
        %v1035 = vadd.f32 %v934, %v1003
        %v1036 = vadd.f32 %v935, %v1004
        %v1037 = vadd.f32 %v936, %v1005
        %v1038 = vadd.f32 %v937, %v1006
        %v1039 = vadd.f32 %v938, %v1007
        %v1040 = vadd.f32 %v939, %v1008
        %s1041 = scalar_lea.vmem %s5, 96
        %v1042 = vld [vmem:[%s1041] sm:$0xff]
        %v1043 = vld [vmem:[%s1041 + $0x8] sm:$0xff]
        %v1044 = vld [vmem:[%s1041 + $0x10] sm:$0xff]
        %v1045 = vld [vmem:[%s1041 + $0x18] sm:$0xff]
        %1046 = vset.pattern.permute.xlu0 3
        %1047 = vperm.xlu0 %1046, %v746
        %v1048 = vpop.permute.xlu0 %1047
        %1050 = vset.pattern.permute.xlu0 3
        %1051 = vperm.xlu0 %1050, %v750
        %v1052 = vpop.permute.xlu0 %1051
        %1054 = vset.pattern.permute.xlu0 3
        %1055 = vperm.xlu0 %1054, %v754
        %v1056 = vpop.permute.xlu0 %1055
        %1058 = vset.pattern.permute.xlu0 3
        %1059 = vperm.xlu0 %1058, %v758
        %v1060 = vpop.permute.xlu0 %1059
        %1062 = vset.pattern.permute.xlu0 3
        %1063 = vperm.xlu0 %1062, %v762
        %v1064 = vpop.permute.xlu0 %1063
        %1066 = vset.pattern.permute.xlu0 3
        %1067 = vperm.xlu0 %1066, %v766
        %v1068 = vpop.permute.xlu0 %1067
        %1070 = vset.pattern.permute.xlu0 3
        %1071 = vperm.xlu0 %1070, %v770
        %v1072 = vpop.permute.xlu0 %1071
        %1074 = vset.pattern.permute.xlu0 3
        %1075 = vperm.xlu0 %1074, %v774
        %v1076 = vpop.permute.xlu0 %1075
        %v1078 = vmul.f32 %v1048, %v1042
        %v1079 = vmul.f32 %v1048, %v1043
        %v1080 = vmul.f32 %v1048, %v1044
        %v1081 = vmul.f32 %v1048, %v1045
        %v1082 = vmul.f32 %v1052, %v1042
        %v1083 = vmul.f32 %v1052, %v1043
        %v1084 = vmul.f32 %v1052, %v1044
        %v1085 = vmul.f32 %v1052, %v1045
        %v1086 = vmul.f32 %v1056, %v1042
        %v1087 = vmul.f32 %v1056, %v1043
        %v1088 = vmul.f32 %v1056, %v1044
        %v1089 = vmul.f32 %v1056, %v1045
        %v1090 = vmul.f32 %v1060, %v1042
        %v1091 = vmul.f32 %v1060, %v1043
        %v1092 = vmul.f32 %v1060, %v1044
        %v1093 = vmul.f32 %v1060, %v1045
        %v1094 = vmul.f32 %v1064, %v1042
        %v1095 = vmul.f32 %v1064, %v1043
        %v1096 = vmul.f32 %v1064, %v1044
        %v1097 = vmul.f32 %v1064, %v1045
        %v1098 = vmul.f32 %v1068, %v1042
        %v1099 = vmul.f32 %v1068, %v1043
        %v1100 = vmul.f32 %v1068, %v1044
        %v1101 = vmul.f32 %v1068, %v1045
        %v1102 = vmul.f32 %v1072, %v1042
        %v1103 = vmul.f32 %v1072, %v1043
        %v1104 = vmul.f32 %v1072, %v1044
        %v1105 = vmul.f32 %v1072, %v1045
        %v1106 = vmul.f32 %v1076, %v1042
        %v1107 = vmul.f32 %v1076, %v1043
        %v1108 = vmul.f32 %v1076, %v1044
        %v1109 = vmul.f32 %v1076, %v1045
        %v1110 = vadd.f32 %v1009, %v1078
        %v1111 = vadd.f32 %v1010, %v1079
        %v1112 = vadd.f32 %v1011, %v1080
        %v1113 = vadd.f32 %v1012, %v1081
        %v1114 = vadd.f32 %v1013, %v1082
        %v1115 = vadd.f32 %v1014, %v1083
        %v1116 = vadd.f32 %v1015, %v1084
        %v1117 = vadd.f32 %v1016, %v1085
        %v1118 = vadd.f32 %v1017, %v1086
        %v1119 = vadd.f32 %v1018, %v1087
        %v1120 = vadd.f32 %v1019, %v1088
        %v1121 = vadd.f32 %v1020, %v1089
        %v1122 = vadd.f32 %v1021, %v1090
        %v1123 = vadd.f32 %v1022, %v1091
        %v1124 = vadd.f32 %v1023, %v1092
        %v1125 = vadd.f32 %v1024, %v1093
        %v1126 = vadd.f32 %v1025, %v1094
        %v1127 = vadd.f32 %v1026, %v1095
        %v1128 = vadd.f32 %v1027, %v1096
        %v1129 = vadd.f32 %v1028, %v1097
        %v1130 = vadd.f32 %v1029, %v1098
        %v1131 = vadd.f32 %v1030, %v1099
        %v1132 = vadd.f32 %v1031, %v1100
        %v1133 = vadd.f32 %v1032, %v1101
        %v1134 = vadd.f32 %v1033, %v1102
        %v1135 = vadd.f32 %v1034, %v1103
        %v1136 = vadd.f32 %v1035, %v1104
        %v1137 = vadd.f32 %v1036, %v1105
        %v1138 = vadd.f32 %v1037, %v1106
        %v1139 = vadd.f32 %v1038, %v1107
        %v1140 = vadd.f32 %v1039, %v1108
        %v1141 = vadd.f32 %v1040, %v1109
        %v1142 = vld [vmem:[%s6] sm:$0xf]
        %v1143 = vsel %vm546, %v688, 0
        %v1146 = vsel %vm571, %v1142, 0
        %1148 = vmatprep.subr.mxu0 0.0
        %1149 = vmatpush1.msra.mxu0 0.0
        %1150 = vmatprep.subr.mxu0 0.0
        %1151 = vmatpush1.msra.mxu0 0.0
        %1152 = vmatprep.subr.mxu0 0.0
        %1153 = vmatpush1.msra.mxu0 0.0
        %1154 = vmatprep.subr.mxu0 0.0
        %1155 = vmatpush1.msra.mxu0 0.0
        %1156 = vmatprep.subr.mxu0 0.0
        %1157 = vmatpush1.msra.mxu0 0.0
        %1158 = vmatprep.subr.mxu0 0.0
        %1159 = vmatpush1.msra.mxu0 0.0
        %1160 = vmatprep.subr.mxu0 0.0
        %1161 = vmatpush1.msra.mxu0 0.0
        %1162 = vmatprep.subr.mxu0 0.0
        %1163 = vmatpush1.msra.mxu0 0.0
        %1164 = vmatprep.subr.mxu0 0.0
        %1165 = vmatpush1.msra.mxu0 0.0
        %1166 = vmatprep.subr.mxu0 0.0
        %1167 = vmatpush1.msra.mxu0 0.0
        %1168 = vmatprep.subr.mxu0 0.0
        %1169 = vmatpush1.msra.mxu0 0.0
        %1170 = vmatprep.subr.mxu0 0.0
        %1171 = vmatpush1.msra.mxu0 0.0
        %1172 = vmatprep.subr.mxu0 0.0
        %1173 = vmatpush1.msra.mxu0 0.0
        %1174 = vmatprep.subr.mxu0 0.0
        %1175 = vmatpush1.msra.mxu0 0.0
        %1176 = vmatprep.subr.mxu0 0.0
        %1177 = vmatpush1.msra.mxu0 0.0
        %1178 = vmatprep.subr.mxu0 0.0
        %1179 = vmatpush1.msra.mxu0 %v1146
        %1180 = vmatprep.subr.mxu0 0.0
        %1181 = vmatpush2.msra.mxu0 0.0
        %1182 = vmatprep.subr.mxu0 0.0
        %1183 = vmatpush2.msra.mxu0 0.0
        %1184 = vmatprep.subr.mxu0 0.0
        %1185 = vmatpush2.msra.mxu0 0.0
        %1186 = vmatprep.subr.mxu0 0.0
        %1187 = vmatpush2.msra.mxu0 0.0
        %1188 = vmatprep.subr.mxu0 0.0
        %1189 = vmatpush2.msra.mxu0 0.0
        %1190 = vmatprep.subr.mxu0 0.0
        %1191 = vmatpush2.msra.mxu0 0.0
        %1192 = vmatprep.subr.mxu0 0.0
        %1193 = vmatpush2.msra.mxu0 0.0
        %1194 = vmatprep.subr.mxu0 0.0
        %1195 = vmatpush2.msra.mxu0 0.0
        %1196 = vmatprep.subr.mxu0 0.0
        %1197 = vmatpush2.msra.mxu0 0.0
        %1198 = vmatprep.subr.mxu0 0.0
        %1199 = vmatpush2.msra.mxu0 0.0
        %1200 = vmatprep.subr.mxu0 0.0
        %1201 = vmatpush2.msra.mxu0 0.0
        %1202 = vmatprep.subr.mxu0 0.0
        %1203 = vmatpush2.msra.mxu0 0.0
        %1204 = vmatprep.subr.mxu0 0.0
        %1205 = vmatpush2.msra.mxu0 0.0
        %1206 = vmatprep.subr.mxu0 0.0
        %1207 = vmatpush2.msra.mxu0 0.0
        %1208 = vmatprep.subr.mxu0 0.0
        %1209 = vmatpush2.msra.mxu0 0.0
        %1210 = vmatprep.subr.mxu0 0.0
        %1211 = vmatpush2.msra.mxu0 0.0
        %1212 = vmatprep.mubr.f32.mxu0 0.0
        %1213 = vmatmul.mubr.f32.gmra.mxu0 %v1143
        %v1214 = vpop.f32.mrf.mxu0
        %v1215 = vadd.f32 0.0, %v1214
        %v1216 = vpop.f32.mrf.mxu0
        %1217 = vdwg.mxu0
        %v1218 = vld [vmem:[%s459] sm:$0xff]
        %v1219 = vld [vmem:[%s459 + $0x8] sm:$0xff]
        %v1220 = vld [vmem:[%s459 + $0x10] sm:$0xff]
        %v1221 = vld [vmem:[%s459 + $0x18] sm:$0xff]
        %v1222 = vld [vmem:[%s459 + $0x20] sm:$0xff]
        %v1223 = vld [vmem:[%s459 + $0x28] sm:$0xff]
        %v1224 = vld [vmem:[%s459 + $0x30] sm:$0xff]
        %v1225 = vld [vmem:[%s459 + $0x38] sm:$0xff]
        %v1227 = vcombine.high %v1215, %v1215
        %v1229 = vunpack.c.l.s4 1966171168
        %v1230 = vunpack.c.0.s8 %v1229
        %v1231 = vlaneseq
        %v1232 = vshrl.u32 %v1231, 7
        %v1233 = vsub.s32 %v1230, %v1232
        %v1234 = vrot.slane %v1215, %v1233
        %v1236 = vunpack.c.l.s4 1966171168
        %v1237 = vunpack.c.0.s8 %v1236
        %v1238 = vlaneseq
        %v1239 = vshrl.u32 %v1238, 7
        %v1240 = vsub.s32 %v1237, %v1239
        %v1241 = vrot.slane %v1227, %v1240
        %v1242 = vcombine.high %v1234, %v1234
        %v1243 = vcombine.high %v1241, %v1241
        %v1245 = vunpack.c.l.s4 1966171168
        %v1246 = vunpack.c.0.s8 %v1245
        %v1247 = vlaneseq
        %v1248 = vshrl.u32 %v1247, 7
        %v1249 = vsub.s32 %v1246, %v1248
        %v1250 = vrot.slane %v1234, %v1249
        %v1252 = vunpack.c.l.s4 1966171168
        %v1253 = vunpack.c.0.s8 %v1252
        %v1254 = vlaneseq
        %v1255 = vshrl.u32 %v1254, 7
        %v1256 = vsub.s32 %v1253, %v1255
        %v1257 = vrot.slane %v1241, %v1256
        %v1259 = vunpack.c.l.s4 1966171168
        %v1260 = vunpack.c.0.s8 %v1259
        %v1261 = vlaneseq
        %v1262 = vshrl.u32 %v1261, 7
        %v1263 = vsub.s32 %v1260, %v1262
        %v1264 = vrot.slane %v1242, %v1263
        %v1266 = vunpack.c.l.s4 1966171168
        %v1267 = vunpack.c.0.s8 %v1266
        %v1268 = vlaneseq
        %v1269 = vshrl.u32 %v1268, 7
        %v1270 = vsub.s32 %v1267, %v1269
        %v1271 = vrot.slane %v1243, %v1270
        %v1272 = vcombine.high %v1250, %v1250
        %v1273 = vcombine.high %v1257, %v1257
        %v1274 = vcombine.high %v1264, %v1264
        %v1275 = vcombine.high %v1271, %v1271
        %v1276 = vlaneseq
        %v1277 = vshrl.u32 %v1276, 7
        %v1278 = vsub.s32 0, %v1277
        %v1279 = vrot.slane %v1250, %v1278
        %v1280 = vlaneseq
        %v1281 = vshrl.u32 %v1280, 7
        %v1282 = vsub.s32 0, %v1281
        %v1283 = vrot.slane %v1264, %v1282
        %v1284 = vlaneseq
        %v1285 = vshrl.u32 %v1284, 7
        %v1286 = vsub.s32 0, %v1285
        %v1287 = vrot.slane %v1272, %v1286
        %v1288 = vlaneseq
        %v1289 = vshrl.u32 %v1288, 7
        %v1290 = vsub.s32 0, %v1289
        %v1291 = vrot.slane %v1274, %v1290
        %v1292 = vlaneseq
        %v1293 = vshrl.u32 %v1292, 7
        %v1294 = vsub.s32 0, %v1293
        %v1295 = vrot.slane %v1257, %v1294
        %v1296 = vlaneseq
        %v1297 = vshrl.u32 %v1296, 7
        %v1298 = vsub.s32 0, %v1297
        %v1299 = vrot.slane %v1271, %v1298
        %v1300 = vlaneseq
        %v1301 = vshrl.u32 %v1300, 7
        %v1302 = vsub.s32 0, %v1301
        %v1303 = vrot.slane %v1273, %v1302
        %v1304 = vlaneseq
        %v1305 = vshrl.u32 %v1304, 7
        %v1306 = vsub.s32 0, %v1305
        %v1307 = vrot.slane %v1275, %v1306
        %vm1316 = vcmask 261120
        %v1318 = vsel %vm1316, %v680, 0
        %1320 = vmatprep.subr.mxu0 0.0
        %1321 = vmatpush1.msra.mxu0 0.0
        %1322 = vmatprep.subr.mxu0 0.0
        %1323 = vmatpush1.msra.mxu0 0.0
        %1324 = vmatprep.subr.mxu0 0.0
        %1325 = vmatpush1.msra.mxu0 0.0
        %1326 = vmatprep.subr.mxu0 0.0
        %1327 = vmatpush1.msra.mxu0 0.0
        %1328 = vmatprep.subr.mxu0 0.0
        %1329 = vmatpush1.msra.mxu0 0.0
        %1330 = vmatprep.subr.mxu0 0.0
        %1331 = vmatpush1.msra.mxu0 0.0
        %1332 = vmatprep.subr.mxu0 0.0
        %1333 = vmatpush1.msra.mxu0 0.0
        %1334 = vmatprep.subr.mxu0 0.0
        %1335 = vmatpush1.msra.mxu0 0.0
        %1336 = vmatprep.subr.mxu0 0.0
        %1337 = vmatpush1.msra.mxu0 0.0
        %1338 = vmatprep.subr.mxu0 0.0
        %1339 = vmatpush1.msra.mxu0 0.0
        %1340 = vmatprep.subr.mxu0 0.0
        %1341 = vmatpush1.msra.mxu0 0.0
        %1342 = vmatprep.subr.mxu0 0.0
        %1343 = vmatpush1.msra.mxu0 0.0
        %1344 = vmatprep.subr.mxu0 0.0
        %1345 = vmatpush1.msra.mxu0 %v1113
        %1346 = vmatprep.subr.mxu0 0.0
        %1347 = vmatpush1.msra.mxu0 %v1112
        %1348 = vmatprep.subr.mxu0 0.0
        %1349 = vmatpush1.msra.mxu0 %v1111
        %1350 = vmatprep.subr.mxu0 0.0
        %1351 = vmatpush1.msra.mxu0 %v1110
        %1352 = vmatprep.subr.mxu0 0.0
        %1353 = vmatpush2.msra.mxu0 0.0
        %1354 = vmatprep.subr.mxu0 0.0
        %1355 = vmatpush2.msra.mxu0 0.0
        %1356 = vmatprep.subr.mxu0 0.0
        %1357 = vmatpush2.msra.mxu0 0.0
        %1358 = vmatprep.subr.mxu0 0.0
        %1359 = vmatpush2.msra.mxu0 0.0
        %1360 = vmatprep.subr.mxu0 0.0
        %1361 = vmatpush2.msra.mxu0 0.0
        %1362 = vmatprep.subr.mxu0 0.0
        %1363 = vmatpush2.msra.mxu0 0.0
        %1364 = vmatprep.subr.mxu0 0.0
        %1365 = vmatpush2.msra.mxu0 0.0
        %1366 = vmatprep.subr.mxu0 0.0
        %1367 = vmatpush2.msra.mxu0 0.0
        %1368 = vmatprep.subr.mxu0 0.0
        %1369 = vmatpush2.msra.mxu0 0.0
        %1370 = vmatprep.subr.mxu0 0.0
        %1371 = vmatpush2.msra.mxu0 0.0
        %1372 = vmatprep.subr.mxu0 0.0
        %1373 = vmatpush2.msra.mxu0 0.0
        %1374 = vmatprep.subr.mxu0 0.0
        %1375 = vmatpush2.msra.mxu0 0.0
        %1376 = vmatprep.subr.mxu0 0.0
        %1377 = vmatpush2.msra.mxu0 0.0
        %1378 = vmatprep.subr.mxu0 0.0
        %1379 = vmatpush2.msra.mxu0 0.0
        %1380 = vmatprep.subr.mxu0 0.0
        %1381 = vmatpush2.msra.mxu0 0.0
        %1382 = vmatprep.subr.mxu0 0.0
        %1383 = vmatpush2.msra.mxu0 0.0
        %1384 = vmatprep.mubr.f32.mxu0 0.0
        %1385 = vmatmul.mubr.f32.gmra.mxu0 %v1318
        %v1386 = vpop.f32.mrf.mxu0
        %v1387 = vadd.f32 %v1279, %v1386
        %v1388 = vpop.f32.mrf.mxu0
        %1389 = vdwg.mxu0
        %v1391 = vsel %vm1316, %v681, 0
        %1393 = vmatprep.subr.mxu0 0.0
        %1394 = vmatpush1.msra.mxu0 0.0
        %1395 = vmatprep.subr.mxu0 0.0
        %1396 = vmatpush1.msra.mxu0 0.0
        %1397 = vmatprep.subr.mxu0 0.0
        %1398 = vmatpush1.msra.mxu0 0.0
        %1399 = vmatprep.subr.mxu0 0.0
        %1400 = vmatpush1.msra.mxu0 0.0
        %1401 = vmatprep.subr.mxu0 0.0
        %1402 = vmatpush1.msra.mxu0 0.0
        %1403 = vmatprep.subr.mxu0 0.0
        %1404 = vmatpush1.msra.mxu0 0.0
        %1405 = vmatprep.subr.mxu0 0.0
        %1406 = vmatpush1.msra.mxu0 0.0
        %1407 = vmatprep.subr.mxu0 0.0
        %1408 = vmatpush1.msra.mxu0 0.0
        %1409 = vmatprep.subr.mxu0 0.0
        %1410 = vmatpush1.msra.mxu0 0.0
        %1411 = vmatprep.subr.mxu0 0.0
        %1412 = vmatpush1.msra.mxu0 0.0
        %1413 = vmatprep.subr.mxu0 0.0
        %1414 = vmatpush1.msra.mxu0 0.0
        %1415 = vmatprep.subr.mxu0 0.0
        %1416 = vmatpush1.msra.mxu0 0.0
        %1417 = vmatprep.subr.mxu0 0.0
        %1418 = vmatpush1.msra.mxu0 %v1117
        %1419 = vmatprep.subr.mxu0 0.0
        %1420 = vmatpush1.msra.mxu0 %v1116
        %1421 = vmatprep.subr.mxu0 0.0
        %1422 = vmatpush1.msra.mxu0 %v1115
        %1423 = vmatprep.subr.mxu0 0.0
        %1424 = vmatpush1.msra.mxu0 %v1114
        %1425 = vmatprep.subr.mxu0 0.0
        %1426 = vmatpush2.msra.mxu0 0.0
        %1427 = vmatprep.subr.mxu0 0.0
        %1428 = vmatpush2.msra.mxu0 0.0
        %1429 = vmatprep.subr.mxu0 0.0
        %1430 = vmatpush2.msra.mxu0 0.0
        %1431 = vmatprep.subr.mxu0 0.0
        %1432 = vmatpush2.msra.mxu0 0.0
        %1433 = vmatprep.subr.mxu0 0.0
        %1434 = vmatpush2.msra.mxu0 0.0
        %1435 = vmatprep.subr.mxu0 0.0
        %1436 = vmatpush2.msra.mxu0 0.0
        %1437 = vmatprep.subr.mxu0 0.0
        %1438 = vmatpush2.msra.mxu0 0.0
        %1439 = vmatprep.subr.mxu0 0.0
        %1440 = vmatpush2.msra.mxu0 0.0
        %1441 = vmatprep.subr.mxu0 0.0
        %1442 = vmatpush2.msra.mxu0 0.0
        %1443 = vmatprep.subr.mxu0 0.0
        %1444 = vmatpush2.msra.mxu0 0.0
        %1445 = vmatprep.subr.mxu0 0.0
        %1446 = vmatpush2.msra.mxu0 0.0
        %1447 = vmatprep.subr.mxu0 0.0
        %1448 = vmatpush2.msra.mxu0 0.0
        %1449 = vmatprep.subr.mxu0 0.0
        %1450 = vmatpush2.msra.mxu0 0.0
        %1451 = vmatprep.subr.mxu0 0.0
        %1452 = vmatpush2.msra.mxu0 0.0
        %1453 = vmatprep.subr.mxu0 0.0
        %1454 = vmatpush2.msra.mxu0 0.0
        %1455 = vmatprep.subr.mxu0 0.0
        %1456 = vmatpush2.msra.mxu0 0.0
        %1457 = vmatprep.mubr.f32.mxu0 0.0
        %1458 = vmatmul.mubr.f32.gmra.mxu0 %v1391
        %v1459 = vpop.f32.mrf.mxu0
        %v1460 = vadd.f32 %v1283, %v1459
        %v1461 = vpop.f32.mrf.mxu0
        %1462 = vdwg.mxu0
        %v1464 = vsel %vm1316, %v682, 0
        %1466 = vmatprep.subr.mxu0 0.0
        %1467 = vmatpush1.msra.mxu0 0.0
        %1468 = vmatprep.subr.mxu0 0.0
        %1469 = vmatpush1.msra.mxu0 0.0
        %1470 = vmatprep.subr.mxu0 0.0
        %1471 = vmatpush1.msra.mxu0 0.0
        %1472 = vmatprep.subr.mxu0 0.0
        %1473 = vmatpush1.msra.mxu0 0.0
        %1474 = vmatprep.subr.mxu0 0.0
        %1475 = vmatpush1.msra.mxu0 0.0
        %1476 = vmatprep.subr.mxu0 0.0
        %1477 = vmatpush1.msra.mxu0 0.0
        %1478 = vmatprep.subr.mxu0 0.0
        %1479 = vmatpush1.msra.mxu0 0.0
        %1480 = vmatprep.subr.mxu0 0.0
        %1481 = vmatpush1.msra.mxu0 0.0
        %1482 = vmatprep.subr.mxu0 0.0
        %1483 = vmatpush1.msra.mxu0 0.0
        %1484 = vmatprep.subr.mxu0 0.0
        %1485 = vmatpush1.msra.mxu0 0.0
        %1486 = vmatprep.subr.mxu0 0.0
        %1487 = vmatpush1.msra.mxu0 0.0
        %1488 = vmatprep.subr.mxu0 0.0
        %1489 = vmatpush1.msra.mxu0 0.0
        %1490 = vmatprep.subr.mxu0 0.0
        %1491 = vmatpush1.msra.mxu0 %v1121
        %1492 = vmatprep.subr.mxu0 0.0
        %1493 = vmatpush1.msra.mxu0 %v1120
        %1494 = vmatprep.subr.mxu0 0.0
        %1495 = vmatpush1.msra.mxu0 %v1119
        %1496 = vmatprep.subr.mxu0 0.0
        %1497 = vmatpush1.msra.mxu0 %v1118
        %1498 = vmatprep.subr.mxu0 0.0
        %1499 = vmatpush2.msra.mxu0 0.0
        %1500 = vmatprep.subr.mxu0 0.0
        %1501 = vmatpush2.msra.mxu0 0.0
        %1502 = vmatprep.subr.mxu0 0.0
        %1503 = vmatpush2.msra.mxu0 0.0
        %1504 = vmatprep.subr.mxu0 0.0
        %1505 = vmatpush2.msra.mxu0 0.0
        %1506 = vmatprep.subr.mxu0 0.0
        %1507 = vmatpush2.msra.mxu0 0.0
        %1508 = vmatprep.subr.mxu0 0.0
        %1509 = vmatpush2.msra.mxu0 0.0
        %1510 = vmatprep.subr.mxu0 0.0
        %1511 = vmatpush2.msra.mxu0 0.0
        %1512 = vmatprep.subr.mxu0 0.0
        %1513 = vmatpush2.msra.mxu0 0.0
        %1514 = vmatprep.subr.mxu0 0.0
        %1515 = vmatpush2.msra.mxu0 0.0
        %1516 = vmatprep.subr.mxu0 0.0
        %1517 = vmatpush2.msra.mxu0 0.0
        %1518 = vmatprep.subr.mxu0 0.0
        %1519 = vmatpush2.msra.mxu0 0.0
        %1520 = vmatprep.subr.mxu0 0.0
        %1521 = vmatpush2.msra.mxu0 0.0
        %1522 = vmatprep.subr.mxu0 0.0
        %1523 = vmatpush2.msra.mxu0 0.0
        %1524 = vmatprep.subr.mxu0 0.0
        %1525 = vmatpush2.msra.mxu0 0.0
        %1526 = vmatprep.subr.mxu0 0.0
        %1527 = vmatpush2.msra.mxu0 0.0
        %1528 = vmatprep.subr.mxu0 0.0
        %1529 = vmatpush2.msra.mxu0 0.0
        %1530 = vmatprep.mubr.f32.mxu0 0.0
        %1531 = vmatmul.mubr.f32.gmra.mxu0 %v1464
        %v1532 = vpop.f32.mrf.mxu0
        %v1533 = vadd.f32 %v1287, %v1532
        %v1534 = vpop.f32.mrf.mxu0
        %1535 = vdwg.mxu0
        %v1537 = vsel %vm1316, %v683, 0
        %1539 = vmatprep.subr.mxu0 0.0
        %1540 = vmatpush1.msra.mxu0 0.0
        %1541 = vmatprep.subr.mxu0 0.0
        %1542 = vmatpush1.msra.mxu0 0.0
        %1543 = vmatprep.subr.mxu0 0.0
        %1544 = vmatpush1.msra.mxu0 0.0
        %1545 = vmatprep.subr.mxu0 0.0
        %1546 = vmatpush1.msra.mxu0 0.0
        %1547 = vmatprep.subr.mxu0 0.0
        %1548 = vmatpush1.msra.mxu0 0.0
        %1549 = vmatprep.subr.mxu0 0.0
        %1550 = vmatpush1.msra.mxu0 0.0
        %1551 = vmatprep.subr.mxu0 0.0
        %1552 = vmatpush1.msra.mxu0 0.0
        %1553 = vmatprep.subr.mxu0 0.0
        %1554 = vmatpush1.msra.mxu0 0.0
        %1555 = vmatprep.subr.mxu0 0.0
        %1556 = vmatpush1.msra.mxu0 0.0
        %1557 = vmatprep.subr.mxu0 0.0
        %1558 = vmatpush1.msra.mxu0 0.0
        %1559 = vmatprep.subr.mxu0 0.0
        %1560 = vmatpush1.msra.mxu0 0.0
        %1561 = vmatprep.subr.mxu0 0.0
        %1562 = vmatpush1.msra.mxu0 0.0
        %1563 = vmatprep.subr.mxu0 0.0
        %1564 = vmatpush1.msra.mxu0 %v1125
        %1565 = vmatprep.subr.mxu0 0.0
        %1566 = vmatpush1.msra.mxu0 %v1124
        %1567 = vmatprep.subr.mxu0 0.0
        %1568 = vmatpush1.msra.mxu0 %v1123
        %1569 = vmatprep.subr.mxu0 0.0
        %1570 = vmatpush1.msra.mxu0 %v1122
        %1571 = vmatprep.subr.mxu0 0.0
        %1572 = vmatpush2.msra.mxu0 0.0
        %1573 = vmatprep.subr.mxu0 0.0
        %1574 = vmatpush2.msra.mxu0 0.0
        %1575 = vmatprep.subr.mxu0 0.0
        %1576 = vmatpush2.msra.mxu0 0.0
        %1577 = vmatprep.subr.mxu0 0.0
        %1578 = vmatpush2.msra.mxu0 0.0
        %1579 = vmatprep.subr.mxu0 0.0
        %1580 = vmatpush2.msra.mxu0 0.0
        %1581 = vmatprep.subr.mxu0 0.0
        %1582 = vmatpush2.msra.mxu0 0.0
        %1583 = vmatprep.subr.mxu0 0.0
        %1584 = vmatpush2.msra.mxu0 0.0
        %1585 = vmatprep.subr.mxu0 0.0
        %1586 = vmatpush2.msra.mxu0 0.0
        %1587 = vmatprep.subr.mxu0 0.0
        %1588 = vmatpush2.msra.mxu0 0.0
        %1589 = vmatprep.subr.mxu0 0.0
        %1590 = vmatpush2.msra.mxu0 0.0
        %1591 = vmatprep.subr.mxu0 0.0
        %1592 = vmatpush2.msra.mxu0 0.0
        %1593 = vmatprep.subr.mxu0 0.0
        %1594 = vmatpush2.msra.mxu0 0.0
        %1595 = vmatprep.subr.mxu0 0.0
        %1596 = vmatpush2.msra.mxu0 0.0
        %1597 = vmatprep.subr.mxu0 0.0
        %1598 = vmatpush2.msra.mxu0 0.0
        %1599 = vmatprep.subr.mxu0 0.0
        %1600 = vmatpush2.msra.mxu0 0.0
        %1601 = vmatprep.subr.mxu0 0.0
        %1602 = vmatpush2.msra.mxu0 0.0
        %1603 = vmatprep.mubr.f32.mxu0 0.0
        %1604 = vmatmul.mubr.f32.gmra.mxu0 %v1537
        %v1605 = vpop.f32.mrf.mxu0
        %v1606 = vadd.f32 %v1291, %v1605
        %v1607 = vpop.f32.mrf.mxu0
        %1608 = vdwg.mxu0
        %v1610 = vsel %vm1316, %v684, 0
        %1612 = vmatprep.subr.mxu0 0.0
        %1613 = vmatpush1.msra.mxu0 0.0
        %1614 = vmatprep.subr.mxu0 0.0
        %1615 = vmatpush1.msra.mxu0 0.0
        %1616 = vmatprep.subr.mxu0 0.0
        %1617 = vmatpush1.msra.mxu0 0.0
        %1618 = vmatprep.subr.mxu0 0.0
        %1619 = vmatpush1.msra.mxu0 0.0
        %1620 = vmatprep.subr.mxu0 0.0
        %1621 = vmatpush1.msra.mxu0 0.0
        %1622 = vmatprep.subr.mxu0 0.0
        %1623 = vmatpush1.msra.mxu0 0.0
        %1624 = vmatprep.subr.mxu0 0.0
        %1625 = vmatpush1.msra.mxu0 0.0
        %1626 = vmatprep.subr.mxu0 0.0
        %1627 = vmatpush1.msra.mxu0 0.0
        %1628 = vmatprep.subr.mxu0 0.0
        %1629 = vmatpush1.msra.mxu0 0.0
        %1630 = vmatprep.subr.mxu0 0.0
        %1631 = vmatpush1.msra.mxu0 0.0
        %1632 = vmatprep.subr.mxu0 0.0
        %1633 = vmatpush1.msra.mxu0 0.0
        %1634 = vmatprep.subr.mxu0 0.0
        %1635 = vmatpush1.msra.mxu0 0.0
        %1636 = vmatprep.subr.mxu0 0.0
        %1637 = vmatpush1.msra.mxu0 %v1129
        %1638 = vmatprep.subr.mxu0 0.0
        %1639 = vmatpush1.msra.mxu0 %v1128
        %1640 = vmatprep.subr.mxu0 0.0
        %1641 = vmatpush1.msra.mxu0 %v1127
        %1642 = vmatprep.subr.mxu0 0.0
        %1643 = vmatpush1.msra.mxu0 %v1126
        %1644 = vmatprep.subr.mxu0 0.0
        %1645 = vmatpush2.msra.mxu0 0.0
        %1646 = vmatprep.subr.mxu0 0.0
        %1647 = vmatpush2.msra.mxu0 0.0
        %1648 = vmatprep.subr.mxu0 0.0
        %1649 = vmatpush2.msra.mxu0 0.0
        %1650 = vmatprep.subr.mxu0 0.0
        %1651 = vmatpush2.msra.mxu0 0.0
        %1652 = vmatprep.subr.mxu0 0.0
        %1653 = vmatpush2.msra.mxu0 0.0
        %1654 = vmatprep.subr.mxu0 0.0
        %1655 = vmatpush2.msra.mxu0 0.0
        %1656 = vmatprep.subr.mxu0 0.0
        %1657 = vmatpush2.msra.mxu0 0.0
        %1658 = vmatprep.subr.mxu0 0.0
        %1659 = vmatpush2.msra.mxu0 0.0
        %1660 = vmatprep.subr.mxu0 0.0
        %1661 = vmatpush2.msra.mxu0 0.0
        %1662 = vmatprep.subr.mxu0 0.0
        %1663 = vmatpush2.msra.mxu0 0.0
        %1664 = vmatprep.subr.mxu0 0.0
        %1665 = vmatpush2.msra.mxu0 0.0
        %1666 = vmatprep.subr.mxu0 0.0
        %1667 = vmatpush2.msra.mxu0 0.0
        %1668 = vmatprep.subr.mxu0 0.0
        %1669 = vmatpush2.msra.mxu0 0.0
        %1670 = vmatprep.subr.mxu0 0.0
        %1671 = vmatpush2.msra.mxu0 0.0
        %1672 = vmatprep.subr.mxu0 0.0
        %1673 = vmatpush2.msra.mxu0 0.0
        %1674 = vmatprep.subr.mxu0 0.0
        %1675 = vmatpush2.msra.mxu0 0.0
        %1676 = vmatprep.mubr.f32.mxu0 0.0
        %1677 = vmatmul.mubr.f32.gmra.mxu0 %v1610
        %v1678 = vpop.f32.mrf.mxu0
        %v1679 = vadd.f32 %v1295, %v1678
        %v1680 = vpop.f32.mrf.mxu0
        %1681 = vdwg.mxu0
        %v1683 = vsel %vm1316, %v685, 0
        %1685 = vmatprep.subr.mxu0 0.0
        %1686 = vmatpush1.msra.mxu0 0.0
        %1687 = vmatprep.subr.mxu0 0.0
        %1688 = vmatpush1.msra.mxu0 0.0
        %1689 = vmatprep.subr.mxu0 0.0
        %1690 = vmatpush1.msra.mxu0 0.0
        %1691 = vmatprep.subr.mxu0 0.0
        %1692 = vmatpush1.msra.mxu0 0.0
        %1693 = vmatprep.subr.mxu0 0.0
        %1694 = vmatpush1.msra.mxu0 0.0
        %1695 = vmatprep.subr.mxu0 0.0
        %1696 = vmatpush1.msra.mxu0 0.0
        %1697 = vmatprep.subr.mxu0 0.0
        %1698 = vmatpush1.msra.mxu0 0.0
        %1699 = vmatprep.subr.mxu0 0.0
        %1700 = vmatpush1.msra.mxu0 0.0
        %1701 = vmatprep.subr.mxu0 0.0
        %1702 = vmatpush1.msra.mxu0 0.0
        %1703 = vmatprep.subr.mxu0 0.0
        %1704 = vmatpush1.msra.mxu0 0.0
        %1705 = vmatprep.subr.mxu0 0.0
        %1706 = vmatpush1.msra.mxu0 0.0
        %1707 = vmatprep.subr.mxu0 0.0
        %1708 = vmatpush1.msra.mxu0 0.0
        %1709 = vmatprep.subr.mxu0 0.0
        %1710 = vmatpush1.msra.mxu0 %v1133
        %1711 = vmatprep.subr.mxu0 0.0
        %1712 = vmatpush1.msra.mxu0 %v1132
        %1713 = vmatprep.subr.mxu0 0.0
        %1714 = vmatpush1.msra.mxu0 %v1131
        %1715 = vmatprep.subr.mxu0 0.0
        %1716 = vmatpush1.msra.mxu0 %v1130
        %1717 = vmatprep.subr.mxu0 0.0
        %1718 = vmatpush2.msra.mxu0 0.0
        %1719 = vmatprep.subr.mxu0 0.0
        %1720 = vmatpush2.msra.mxu0 0.0
        %1721 = vmatprep.subr.mxu0 0.0
        %1722 = vmatpush2.msra.mxu0 0.0
        %1723 = vmatprep.subr.mxu0 0.0
        %1724 = vmatpush2.msra.mxu0 0.0
        %1725 = vmatprep.subr.mxu0 0.0
        %1726 = vmatpush2.msra.mxu0 0.0
        %1727 = vmatprep.subr.mxu0 0.0
        %1728 = vmatpush2.msra.mxu0 0.0
        %1729 = vmatprep.subr.mxu0 0.0
        %1730 = vmatpush2.msra.mxu0 0.0
        %1731 = vmatprep.subr.mxu0 0.0
        %1732 = vmatpush2.msra.mxu0 0.0
        %1733 = vmatprep.subr.mxu0 0.0
        %1734 = vmatpush2.msra.mxu0 0.0
        %1735 = vmatprep.subr.mxu0 0.0
        %1736 = vmatpush2.msra.mxu0 0.0
        %1737 = vmatprep.subr.mxu0 0.0
        %1738 = vmatpush2.msra.mxu0 0.0
        %1739 = vmatprep.subr.mxu0 0.0
        %1740 = vmatpush2.msra.mxu0 0.0
        %1741 = vmatprep.subr.mxu0 0.0
        %1742 = vmatpush2.msra.mxu0 0.0
        %1743 = vmatprep.subr.mxu0 0.0
        %1744 = vmatpush2.msra.mxu0 0.0
        %1745 = vmatprep.subr.mxu0 0.0
        %1746 = vmatpush2.msra.mxu0 0.0
        %1747 = vmatprep.subr.mxu0 0.0
        %1748 = vmatpush2.msra.mxu0 0.0
        %1749 = vmatprep.mubr.f32.mxu0 0.0
        %1750 = vmatmul.mubr.f32.gmra.mxu0 %v1683
        %v1751 = vpop.f32.mrf.mxu0
        %v1752 = vadd.f32 %v1299, %v1751
        %v1753 = vpop.f32.mrf.mxu0
        %1754 = vdwg.mxu0
        %v1756 = vsel %vm1316, %v686, 0
        %1758 = vmatprep.subr.mxu0 0.0
        %1759 = vmatpush1.msra.mxu0 0.0
        %1760 = vmatprep.subr.mxu0 0.0
        %1761 = vmatpush1.msra.mxu0 0.0
        %1762 = vmatprep.subr.mxu0 0.0
        %1763 = vmatpush1.msra.mxu0 0.0
        %1764 = vmatprep.subr.mxu0 0.0
        %1765 = vmatpush1.msra.mxu0 0.0
        %1766 = vmatprep.subr.mxu0 0.0
        %1767 = vmatpush1.msra.mxu0 0.0
        %1768 = vmatprep.subr.mxu0 0.0
        %1769 = vmatpush1.msra.mxu0 0.0
        %1770 = vmatprep.subr.mxu0 0.0
        %1771 = vmatpush1.msra.mxu0 0.0
        %1772 = vmatprep.subr.mxu0 0.0
        %1773 = vmatpush1.msra.mxu0 0.0
        %1774 = vmatprep.subr.mxu0 0.0
        %1775 = vmatpush1.msra.mxu0 0.0
        %1776 = vmatprep.subr.mxu0 0.0
        %1777 = vmatpush1.msra.mxu0 0.0
        %1778 = vmatprep.subr.mxu0 0.0
        %1779 = vmatpush1.msra.mxu0 0.0
        %1780 = vmatprep.subr.mxu0 0.0
        %1781 = vmatpush1.msra.mxu0 0.0
        %1782 = vmatprep.subr.mxu0 0.0
        %1783 = vmatpush1.msra.mxu0 %v1137
        %1784 = vmatprep.subr.mxu0 0.0
        %1785 = vmatpush1.msra.mxu0 %v1136
        %1786 = vmatprep.subr.mxu0 0.0
        %1787 = vmatpush1.msra.mxu0 %v1135
        %1788 = vmatprep.subr.mxu0 0.0
        %1789 = vmatpush1.msra.mxu0 %v1134
        %1790 = vmatprep.subr.mxu0 0.0
        %1791 = vmatpush2.msra.mxu0 0.0
        %1792 = vmatprep.subr.mxu0 0.0
        %1793 = vmatpush2.msra.mxu0 0.0
        %1794 = vmatprep.subr.mxu0 0.0
        %1795 = vmatpush2.msra.mxu0 0.0
        %1796 = vmatprep.subr.mxu0 0.0
        %1797 = vmatpush2.msra.mxu0 0.0
        %1798 = vmatprep.subr.mxu0 0.0
        %1799 = vmatpush2.msra.mxu0 0.0
        %1800 = vmatprep.subr.mxu0 0.0
        %1801 = vmatpush2.msra.mxu0 0.0
        %1802 = vmatprep.subr.mxu0 0.0
        %1803 = vmatpush2.msra.mxu0 0.0
        %1804 = vmatprep.subr.mxu0 0.0
        %1805 = vmatpush2.msra.mxu0 0.0
        %1806 = vmatprep.subr.mxu0 0.0
        %1807 = vmatpush2.msra.mxu0 0.0
        %1808 = vmatprep.subr.mxu0 0.0
        %1809 = vmatpush2.msra.mxu0 0.0
        %1810 = vmatprep.subr.mxu0 0.0
        %1811 = vmatpush2.msra.mxu0 0.0
        %1812 = vmatprep.subr.mxu0 0.0
        %1813 = vmatpush2.msra.mxu0 0.0
        %1814 = vmatprep.subr.mxu0 0.0
        %1815 = vmatpush2.msra.mxu0 0.0
        %1816 = vmatprep.subr.mxu0 0.0
        %1817 = vmatpush2.msra.mxu0 0.0
        %1818 = vmatprep.subr.mxu0 0.0
        %1819 = vmatpush2.msra.mxu0 0.0
        %1820 = vmatprep.subr.mxu0 0.0
        %1821 = vmatpush2.msra.mxu0 0.0
        %1822 = vmatprep.mubr.f32.mxu0 0.0
        %1823 = vmatmul.mubr.f32.gmra.mxu0 %v1756
        %v1824 = vpop.f32.mrf.mxu0
        %v1825 = vadd.f32 %v1303, %v1824
        %v1826 = vpop.f32.mrf.mxu0
        %1827 = vdwg.mxu0
        %v1829 = vsel %vm1316, %v687, 0
        %1831 = vmatprep.subr.mxu0 0.0
        %1832 = vmatpush1.msra.mxu0 0.0
        %1833 = vmatprep.subr.mxu0 0.0
        %1834 = vmatpush1.msra.mxu0 0.0
        %1835 = vmatprep.subr.mxu0 0.0
        %1836 = vmatpush1.msra.mxu0 0.0
        %1837 = vmatprep.subr.mxu0 0.0
        %1838 = vmatpush1.msra.mxu0 0.0
        %1839 = vmatprep.subr.mxu0 0.0
        %1840 = vmatpush1.msra.mxu0 0.0
        %1841 = vmatprep.subr.mxu0 0.0
        %1842 = vmatpush1.msra.mxu0 0.0
        %1843 = vmatprep.subr.mxu0 0.0
        %1844 = vmatpush1.msra.mxu0 0.0
        %1845 = vmatprep.subr.mxu0 0.0
        %1846 = vmatpush1.msra.mxu0 0.0
        %1847 = vmatprep.subr.mxu0 0.0
        %1848 = vmatpush1.msra.mxu0 0.0
        %1849 = vmatprep.subr.mxu0 0.0
        %1850 = vmatpush1.msra.mxu0 0.0
        %1851 = vmatprep.subr.mxu0 0.0
        %1852 = vmatpush1.msra.mxu0 0.0
        %1853 = vmatprep.subr.mxu0 0.0
        %1854 = vmatpush1.msra.mxu0 0.0
        %1855 = vmatprep.subr.mxu0 0.0
        %1856 = vmatpush1.msra.mxu0 %v1141
        %1857 = vmatprep.subr.mxu0 0.0
        %1858 = vmatpush1.msra.mxu0 %v1140
        %1859 = vmatprep.subr.mxu0 0.0
        %1860 = vmatpush1.msra.mxu0 %v1139
        %1861 = vmatprep.subr.mxu0 0.0
        %1862 = vmatpush1.msra.mxu0 %v1138
        %1863 = vmatprep.subr.mxu0 0.0
        %1864 = vmatpush2.msra.mxu0 0.0
        %1865 = vmatprep.subr.mxu0 0.0
        %1866 = vmatpush2.msra.mxu0 0.0
        %1867 = vmatprep.subr.mxu0 0.0
        %1868 = vmatpush2.msra.mxu0 0.0
        %1869 = vmatprep.subr.mxu0 0.0
        %1870 = vmatpush2.msra.mxu0 0.0
        %1871 = vmatprep.subr.mxu0 0.0
        %1872 = vmatpush2.msra.mxu0 0.0
        %1873 = vmatprep.subr.mxu0 0.0
        %1874 = vmatpush2.msra.mxu0 0.0
        %1875 = vmatprep.subr.mxu0 0.0
        %1876 = vmatpush2.msra.mxu0 0.0
        %1877 = vmatprep.subr.mxu0 0.0
        %1878 = vmatpush2.msra.mxu0 0.0
        %1879 = vmatprep.subr.mxu0 0.0
        %1880 = vmatpush2.msra.mxu0 0.0
        %1881 = vmatprep.subr.mxu0 0.0
        %1882 = vmatpush2.msra.mxu0 0.0
        %1883 = vmatprep.subr.mxu0 0.0
        %1884 = vmatpush2.msra.mxu0 0.0
        %1885 = vmatprep.subr.mxu0 0.0
        %1886 = vmatpush2.msra.mxu0 0.0
        %1887 = vmatprep.subr.mxu0 0.0
        %1888 = vmatpush2.msra.mxu0 0.0
        %1889 = vmatprep.subr.mxu0 0.0
        %1890 = vmatpush2.msra.mxu0 0.0
        %1891 = vmatprep.subr.mxu0 0.0
        %1892 = vmatpush2.msra.mxu0 0.0
        %1893 = vmatprep.subr.mxu0 0.0
        %1894 = vmatpush2.msra.mxu0 0.0
        %1895 = vmatprep.mubr.f32.mxu0 0.0
        %1896 = vmatmul.mubr.f32.gmra.mxu0 %v1829
        %v1897 = vpop.f32.mrf.mxu0
        %v1898 = vadd.f32 %v1307, %v1897
        %v1899 = vpop.f32.mrf.mxu0
        %1900 = vdwg.mxu0
        %1902 = vset.pattern.permute.xlu0 0
        %1903 = vperm.xlu0 %1902, %v1218
        %v1904 = vpop.permute.xlu0 %1903
        %1907 = vset.pattern.permute.xlu0 0
        %1908 = vperm.xlu0 %1907, %v1219
        %v1909 = vpop.permute.xlu0 %1908
        %1912 = vset.pattern.permute.xlu0 0
        %1913 = vperm.xlu0 %1912, %v1220
        %v1914 = vpop.permute.xlu0 %1913
        %1917 = vset.pattern.permute.xlu0 0
        %1918 = vperm.xlu0 %1917, %v1221
        %v1919 = vpop.permute.xlu0 %1918
        %1922 = vset.pattern.permute.xlu0 0
        %1923 = vperm.xlu0 %1922, %v1222
        %v1924 = vpop.permute.xlu0 %1923
        %1927 = vset.pattern.permute.xlu0 0
        %1928 = vperm.xlu0 %1927, %v1223
        %v1929 = vpop.permute.xlu0 %1928
        %1932 = vset.pattern.permute.xlu0 0
        %1933 = vperm.xlu0 %1932, %v1224
        %v1934 = vpop.permute.xlu0 %1933
        %1937 = vset.pattern.permute.xlu0 0
        %1938 = vperm.xlu0 %1937, %v1225
        %v1939 = vpop.permute.xlu0 %1938
        %v1941 = vmul.f32 %v1387, %v1904
        %v1942 = vmul.f32 %v1460, %v1909
        %v1943 = vmul.f32 %v1533, %v1914
        %v1944 = vmul.f32 %v1606, %v1919
        %v1945 = vmul.f32 %v1679, %v1924
        %v1946 = vmul.f32 %v1752, %v1929
        %v1947 = vmul.f32 %v1825, %v1934
        %v1948 = vmul.f32 %v1898, %v1939
        %vm1949 = vcmask 64512
        %v1950 = vsel %vm1949, %v1941, 0.0
        %v1951 = vsel %vm1949, %v1942, 0.0
        %v1952 = vadd.f32 %v1950, %v1951
        %v1953 = vsel %vm1949, %v1943, 0.0
        %v1954 = vadd.f32 %v1952, %v1953
        %v1955 = vsel %vm1949, %v1944, 0.0
        %v1956 = vadd.f32 %v1954, %v1955
        %v1957 = vsel %vm1949, %v1945, 0.0
        %v1958 = vadd.f32 %v1956, %v1957
        %v1959 = vsel %vm1949, %v1946, 0.0
        %v1960 = vadd.f32 %v1958, %v1959
        %v1961 = vsel %vm1949, %v1947, 0.0
        %v1962 = vadd.f32 %v1960, %v1961
        %v1963 = vsel %vm1949, %v1948, 0.0
        %v1964 = vadd.f32 %v1962, %v1963
        %p1965 = scmp.eq.s32.totalorder %s26, 0
        // Predicated region
        $region129: #{tpu_custom_call.1} parent=119 // pred_check
          %p1966 = pneg %p1965
        $region130: #{tpu_custom_call.1} parent=119 // pred_check_branch
          %1968 = sbr.rel (%p1966) target = $region132
        $region131: #{tpu_custom_call.1} parent=119 // pred_region
          %v1969 = vld [vmem:[%s7] sm:$0x1]
          %v1971 = vlaneseq
          %v1972 = vshrl.u32 %v1971, 7
          %v1973 = vsub.s32 0, %v1972
          %v1974 = vrot.slane %v1969, %v1973
          %v1976 = vadd.f32 %v1964, %v1974
          %1977 = vst.msk [vmem:[%s529] sm:$0xff] %vm1949, %v1976
        $region132: #{tpu_custom_call.1} parent=119 // pred_fallthru
          _
        %p1978 = scmp.ne.s32.totalorder %s26, 0
        // Predicated region
        $region133: #{tpu_custom_call.1} parent=119 // pred_check
          %p1979 = pneg %p1978
        $region134: #{tpu_custom_call.1} parent=119 // pred_check_branch
          %1981 = sbr.rel (%p1979) target = $region136
        $region135: #{tpu_custom_call.1} parent=119 // pred_region
          %v1982 = vld [vmem:[%s529] sm:$0xff]
          %v1983 = vadd.f32 %v1982, %v1964
          %1984 = vst.msk [vmem:[%s529] sm:$0xff] %vm1949, %v1983
        $region136: #{tpu_custom_call.1} parent=119 // pred_fallthru
          _
        %p1985 = scmp.lt.s32.totalorder %s24, 1
        %s1986 = scalar_select %p1985, %s24, 1
        %p1987 = scmp.lt.s32.totalorder %s25, 1
        %s1988 = scalar_select %p1987, %s25, 1
        %s1989 = smul.addr %s1986, 2
        %s1990 = sadd.s32 %s1988, %s1989
        %s1991 = smul.addr %s1990, 8
        %s1992 = scalar_lea.vmem %s8, %s1991
        // Predicated region
        $region137: #{tpu_custom_call.1} parent=119 // pred_check
          %p1993 = pneg %p251
        $region138: #{tpu_custom_call.1} parent=119 // pred_check_branch
          %1995 = sbr.rel (%p1993) target = $region140
        $region139: #{tpu_custom_call.1} parent=119 // pred_region
          _
        $region140: #{tpu_custom_call.1} parent=119 // pred_fallthru
          _
      $region120: #{tpu_custom_call.1} parent=5 // pred_fallthru
        _
      %p1996 = scmp.le.s32.totalorder 2, %s14
      // Predicated region
      $region141: #{tpu_custom_call.1} parent=5 // pred_check
        %p1997 = pneg %p1996
      $region142: #{tpu_custom_call.1} parent=5 // pred_check_branch
        %1999 = sbr.rel (%p1997) target = $region144
      $region143: #{tpu_custom_call.1} parent=5 // pred_region
        %s2000 = ssub.s32 %s14, 2
        // Predicated region
        $region145: #{tpu_custom_call.1} parent=143 // pred_check
          %p2001 = pneg %p257
        $region146: #{tpu_custom_call.1} parent=143 // pred_check_branch
          %2003 = sbr.rel (%p2001) target = $region148
        $region147: #{tpu_custom_call.1} parent=143 // pred_region
          %p2004 = scmp.lt.s32.totalorder %s27, 1
          %s2005 = scalar_select %p2004, %s27, 1
          %p2006 = scmp.lt.s32.totalorder %s28, 1
          %s2007 = scalar_select %p2006, %s28, 1
          %s2008 = smul.addr %s2005, 2
          %s2009 = sadd.s32 %s2007, %s2008
          %s2010 = smul.addr %s2009, 8
          %s2011 = scalar_lea.vmem %s8, %s2010
        $region148: #{tpu_custom_call.1} parent=143 // pred_fallthru
          _
      $region144: #{tpu_custom_call.1} parent=5 // pred_fallthru
        _
    $region6: #{tpu_custom_call.1} parent=1 // loop_footer
      %s18 = sadd.s32 1, %s14
    $region7: #{tpu_custom_call.1} parent=1 // loop_footer_branch
      %13 = sbr.rel target = $region3
    $region8: #{tpu_custom_call.1} parent=1 // loop_exit
      _

</llo_original>
